<compile_context>
chip_gen: v7x
topology: tpu7x:2x2x1
jax: 0.10.0
libtpu: 0.0.40
codegen_flags: <defaults>
</compile_context>

<pallas_src>
import jax
import jax.numpy as jnp
from jax import lax
from jax.experimental import pallas as pl
from jax.experimental.pallas import tpu as pltpu

_NEG_BIG = -1e30


# ----------------------------- in-kernel helpers -----------------------------

def _elu(x):
    # ELU(alpha=1): x if x>0 else exp(x)-1 (clamp untaken exp arg)
    return jnp.where(x > 0, x, jnp.exp(jnp.minimum(x, 0.0)) - 1.0)


def _graph_norm(x, mask, inv_cnt, weight, bias, mean_scale, eps=1e-5):
    """PyG GraphNorm over the valid (mask==1) rows of one graph chunk."""
    xm = x * mask
    mean = jnp.sum(xm, axis=0, keepdims=True) * inv_cnt
    out = x - mean * mean_scale
    om = out * mask
    var = jnp.sum(om * om, axis=0, keepdims=True) * inv_cnt
    return out * lax.rsqrt(var + eps) * weight + bias


def _gat_dense(h_in, adj_bias, W, att_src, att_dst, bias, out_scratch=None):
    """Dense GATConv on a whole (B, F) block.

    adj_bias: (B, B) additive mask (0 for edge / self-loop, -1e30 otherwise).
    att_src / att_dst: (heads, C).  Multi-head outputs go into out_scratch
    (VMEM ref, (B, heads*C) f32) to avoid a concatenate.
    """
    heads, C = att_src.shape
    bf16 = jnp.bfloat16
    # feature transform on the MXU, bf16 inputs, f32 accumulate
    h = jnp.dot(h_in.astype(bf16), W.astype(bf16),
                preferred_element_type=jnp.float32)            # (B, heads*C)

    def one_head(hd):
        # NOTE: per-head 8-lane slice is unavoidable at C=8; see review item on
        # padding hid to 128 if model dims are tunable.
        hh = h[:, hd * C:(hd + 1) * C]                          # (B, C)
        # attention scores on VPU (multiply) + XLU (lane reduce / tiny transpose);
        # M=1 / N=1 matmuls would waste the MXU.
        s_src = jnp.sum(hh * att_src[hd:hd + 1, :], axis=1, keepdims=True)  # (B,1)
        s_dst = jnp.sum(hh * att_dst[hd:hd + 1, :], axis=1, keepdims=True)  # (B,1)
        e = s_dst + s_src.T                                     # e[i,j]=sd[i]+ss[j]
        e = jnp.where(e > 0, e, 0.2 * e) + adj_bias             # leaky_relu + mask
        m = jnp.max(e, axis=1, keepdims=True)                   # finite (self-loops)
        p = jnp.exp(e - m)                                      # masked -> exactly 0
        denom = jnp.sum(p, axis=1, keepdims=True)
        alpha = p * pl.reciprocal(denom, approx=True)           # EUP, not VALU divide
        return jnp.dot(alpha.astype(bf16), hh.astype(bf16),
                       preferred_element_type=jnp.float32)      # (B, C)

    if heads == 1:
        return one_head(0) + bias
    for hd in range(heads):
        out_scratch[:, hd * C:(hd + 1) * C] = one_head(hd)
    return out_scratch[...] + bias


# --------------------------------- kernel ------------------------------------

def _gnn_kernel(flags_ref,                                   # scalar prefetch (SMEM)
                x_ref, adj_ref, mask_ref,
                w1_ref, as1_ref, ad1_ref, b1_ref, n1w_ref, n1b_ref, n1ms_ref,
                w2_ref, as2_ref, ad2_ref, b2_ref, n2w_ref, n2b_ref, n2ms_ref,
                w3_ref, as3_ref, ad3_ref, b3_ref,
                wres_ref, bres_ref,
                out_ref,
                h1_scratch):
    x = x_ref[...]                                            # (B, in_ch) f32
    mask = mask_ref[...]                                      # (B, 1) f32 valid-rows
    inv_cnt = 1.0 / jnp.sum(mask, axis=0, keepdims=True)      # (1, 1)

    # hoisted edge mask: int8 adj -> additive bias, shared by all heads / layers
    adjf = adj_ref[...].astype(jnp.float32)                   # (B, B)
    adj_bias = jnp.where(adjf > 0.0, 0.0, _NEG_BIG)

    bf16 = jnp.bfloat16
    # residual branch (MXU, bf16 in / f32 acc)
    res = jnp.dot(x.astype(bf16), wres_ref[...].astype(bf16),
                  preferred_element_type=jnp.float32) + bres_ref[...]

    # layer 1: GAT (heads=4, concat) -> GraphNorm -> ELU   (dropout = identity)
    h = _gat_dense(x, adj_bias, w1_ref[...], as1_ref[...], ad1_ref[...],
                   b1_ref[...], out_scratch=h1_scratch)
    h = _elu(_graph_norm(h, mask, inv_cnt, n1w_ref[...], n1b_ref[...], n1ms_ref[...]))

    # layer 2: GAT (heads=1) -> GraphNorm -> ELU
    h = _gat_dense(h, adj_bias, w2_ref[...], as2_ref[...], ad2_ref[...], b2_ref[...])
    h = _elu(_graph_norm(h, mask, inv_cnt, n2w_ref[...], n2b_ref[...], n2ms_ref[...]))

    # layer 3: GAT (heads=1)
    h = _gat_dense(h, adj_bias, w3_ref[...], as3_ref[...], ad3_ref[...], b3_ref[...])

    # BatchGNN semantics: edge-less chunk -> residual (res_fc) only
    gate = (flags_ref[pl.program_id(0)] > 0).astype(jnp.float32)
    out_ref[...] = res + gate * h


# ------------------------------ python wrappers -------------------------------

_PARAM_ORDER = ("w1", "as1", "ad1", "b1", "n1w", "n1b", "n1ms",
                "w2", "as2", "ad2", "b2", "n2w", "n2b", "n2ms",
                "w3", "as3", "ad3", "b3",
                "wres", "bres")


def _prepare_batches(x, edge_index, batch_nodes, force_conv):
    """Pad nodes to num_batches*B, build per-batch int8 adjacency (with self-loops,
    PyG GATConv default), validity masks and has-edges flags."""
    n, f_in = x.shape
    b = batch_nodes
    nb = (n + b - 1) // b
    np_ = nb * b

    xb = jnp.zeros((np_, f_in), x.dtype).at[:n].set(x).reshape(nb, b, f_in)
    maskb = (jnp.arange(np_) < n).astype(jnp.float32).reshape(nb, b, 1)

    src = edge_index[0].astype(jnp.int32)
    dst = edge_index[1].astype(jnp.int32)
    bs, bd = src // b, dst // b
    same = (bs == bd)                         # only intra-chunk edges (as in BatchGNN)
    val = same.astype(jnp.int32)

    adj = jnp.zeros((nb, b, b), jnp.int32)
    adj = adj.at[bd, dst % b, src % b].max(val)            # adj[batch, dst, src]
    adj = jnp.maximum(adj, jnp.eye(b, dtype=jnp.int32)[None])   # self-loops
    adjb = adj.astype(jnp.int8)

    ecnt = jnp.zeros((nb,), jnp.int32).at[bd].add(val)
    if force_conv:
        flags = jnp.ones((nb,), jnp.int32)       # whole-graph path always runs convs
    else:
        flags = (ecnt > 0).astype(jnp.int32)
    return xb, adjb, maskb, flags


def _forward_batched(xb, adjb, maskb, flags, params):
    nb, b, f_in = xb.shape
    out_ch = params["wres"].shape[1]
    heads, hid = params["as1"].shape

    in_specs = [
        pl.BlockSpec((None, b, f_in), lambda i, *_: (i, 0, 0)),   # x
        pl.BlockSpec((None, b, b),    lambda i, *_: (i, 0, 0)),   # adj (int8)
        pl.BlockSpec((None, b, 1),    lambda i, *_: (i, 0, 0)),   # node mask
    ] + [
        pl.BlockSpec(params[k].shape, lambda i, *_: (0, 0))       # resident weights
        for k in _PARAM_ORDER
    ]

    grid_spec = pltpu.PrefetchScalarGridSpec(
        num_scalar_prefetch=1,                 # per-batch has-edges flags (SMEM)
        grid=(nb,),
        in_specs=in_specs,
        out_specs=pl.BlockSpec((None, b, out_ch), lambda i, *_: (i, 0, 0)),
        scratch_shapes=[pltpu.VMEM((b, heads * hid), jnp.float32)],
    )
    return pl.pallas_call(
        _gnn_kernel,
        out_shape=jax.ShapeDtypeStruct((nb, b, out_ch), jnp.float32),
        grid_spec=grid_spec,
        compiler_params=pltpu.CompilerParams(
            dimension_semantics=("parallel",)),
    )(flags, xb, adjb, maskb, *[params[k] for k in _PARAM_ORDER])


def batch_gnn_forward(x, edge_index, params, batch_size=None):
    """Mirrors BatchGNN.forward (dropout in eval mode)."""
    n = x.shape[0]
    if batch_size is None or n <= batch_size:
        b, force_conv = n, True
    else:
        b, force_conv = batch_size, False

    # Per-grid-step VMEM is dominated by the (B,B) attention intermediates
    # (~13*B^2 bytes, adj itself is int8).  Keep it well inside the default
    # scoped VMEM limit (and v7x's 64 MiB physical VMEM).
    # TODO(synk): for larger chunks, tile the N^2 softmax over dst-row tiles.
    if 16 * b * b > 24 * 1024 * 1024:
        raise ValueError(
            f"chunk of {b} nodes exceeds the whole-block VMEM budget; "
            f"pass a smaller batch_size")

    xb, adjb, maskb, flags = _prepare_batches(x, edge_index, b, force_conv)
    out = _forward_batched(xb, adjb, maskb, flags, params)
    return out.reshape(-1, out.shape[-1])[:n]


def init_params(key, in_ch, hid, out_ch, heads):
    ks = jax.random.split(key, 16)
    f32 = jnp.float32
    nrm = lambda k, s: 0.1 * jax.random.normal(k, s, dtype=f32)
    return {
        # conv1: in -> hid per head, heads=heads, concat
        "w1": nrm(ks[0], (in_ch, heads * hid)),
        "as1": nrm(ks[1], (heads, hid)),
        "ad1": nrm(ks[2], (heads, hid)),
        "b1": jnp.zeros((1, heads * hid), f32),
        "n1w": jnp.ones((1, heads * hid), f32),
        "n1b": jnp.zeros((1, heads * hid), f32),
        "n1ms": jnp.ones((1, heads * hid), f32),
        # conv2: heads*hid -> hid, heads=1
        "w2": nrm(ks[3], (heads * hid, hid)),
        "as2": nrm(ks[4], (1, hid)),
        "ad2": nrm(ks[5], (1, hid)),
        "b2": jnp.zeros((1, hid), f32),
        "n2w": jnp.ones((1, hid), f32),
        "n2b": jnp.zeros((1, hid), f32),
        "n2ms": jnp.ones((1, hid), f32),
        # conv3: hid -> out, heads=1
        "w3": nrm(ks[6], (hid, out_ch)),
        "as3": nrm(ks[7], (1, out_ch)),
        "ad3": nrm(ks[8], (1, out_ch)),
        "b3": jnp.zeros((1, out_ch), f32),
        # residual Linear
        "wres": nrm(ks[9], (in_ch, out_ch)),
        "bres": jnp.zeros((1, out_ch), f32),
    }


if __name__ == "__main__":
    IN_CH, HID, OUT_CH, HEADS = 8, 8, 4, 4
    N_NODES, N_EDGES = 16, 40

    key = jax.random.PRNGKey(0)
    kx, ks, kd, kp = jax.random.split(key, 4)

    x = jax.random.normal(kx, (N_NODES, IN_CH), dtype=jnp.float32)
    src = jax.random.randint(ks, (N_EDGES,), 0, N_NODES)
    dst = jax.random.randint(kd, (N_EDGES,), 0, N_NODES)
    edge_index = jnp.stack([src, dst], axis=0)  # (2, E)

    params = init_params(kp, IN_CH, HID, OUT_CH, HEADS)

    # TODO(synk): F.dropout / GATConv attention dropout are identity here (eval
    # mode); training-mode dropout masks are not reproduced.
    out_full = batch_gnn_forward(x, edge_index, params, batch_size=None)     # 1 chunk
    out_batched = batch_gnn_forward(x, edge_index, params, batch_size=8)     # 2 chunks
    jax.block_until_ready((out_full, out_batched))

    assert out_full.shape == (N_NODES, OUT_CH)
    assert out_batched.shape == (N_NODES, OUT_CH)
    assert bool(jnp.all(jnp.isfinite(out_full)))
    assert bool(jnp.all(jnp.isfinite(out_batched)))
    print("KERNEL_OK")
</pallas_src>

<mosaic_0001>
module attributes {stable_mosaic.version = 11 : i64} {
  func.func @_gnn_kernel(%arg0: i32, %arg1: memref<1xi32, #tpu.memory_space<smem>>, %arg2: memref<1x16x8xf32, #tpu.memory_space<vmem>>, %arg3: memref<1x16x16xi8, #tpu.memory_space<vmem>>, %arg4: memref<1x16x1xf32, #tpu.memory_space<vmem>>, %arg5: memref<8x32xf32, #tpu.memory_space<vmem>>, %arg6: memref<4x8xf32, #tpu.memory_space<vmem>>, %arg7: memref<4x8xf32, #tpu.memory_space<vmem>>, %arg8: memref<1x32xf32, #tpu.memory_space<vmem>>, %arg9: memref<1x32xf32, #tpu.memory_space<vmem>>, %arg10: memref<1x32xf32, #tpu.memory_space<vmem>>, %arg11: memref<1x32xf32, #tpu.memory_space<vmem>>, %arg12: memref<32x8xf32, #tpu.memory_space<vmem>>, %arg13: memref<1x8xf32, #tpu.memory_space<vmem>>, %arg14: memref<1x8xf32, #tpu.memory_space<vmem>>, %arg15: memref<1x8xf32, #tpu.memory_space<vmem>>, %arg16: memref<1x8xf32, #tpu.memory_space<vmem>>, %arg17: memref<1x8xf32, #tpu.memory_space<vmem>>, %arg18: memref<1x8xf32, #tpu.memory_space<vmem>>, %arg19: memref<8x4xf32, #tpu.memory_space<vmem>>, %arg20: memref<1x4xf32, #tpu.memory_space<vmem>>, %arg21: memref<1x4xf32, #tpu.memory_space<vmem>>, %arg22: memref<1x4xf32, #tpu.memory_space<vmem>>, %arg23: memref<8x4xf32, #tpu.memory_space<vmem>>, %arg24: memref<1x4xf32, #tpu.memory_space<vmem>>, %arg25: memref<1x16x4xf32, #tpu.memory_space<vmem>>, %arg26: memref<16x32xf32, #tpu.memory_space<vmem>>) attributes {dimension_semantics = [#tpu.dimension_semantics<parallel>], iteration_bounds = array<i64: 1>, scalar_prefetch = 1 : i64, scratch_operands = 1 : i64, tpu.core_type = #tpu.core_type<tc>, window_params = [{transform_indices = @transform_0, window_bounds = array<i64: 1, 16, 8>}, {transform_indices = @transform_1, window_bounds = array<i64: 1, 16, 16>}, {transform_indices = @transform_2, window_bounds = array<i64: 1, 16, 1>}, {pipeline_mode = #tpu.pipeline_mode<synchronous>, transform_indices = @transform_3, window_bounds = array<i64: 8, 32>}, {pipeline_mode = #tpu.pipeline_mode<synchronous>, transform_indices = @transform_4, window_bounds = array<i64: 4, 8>}, {pipeline_mode = #tpu.pipeline_mode<synchronous>, transform_indices = @transform_5, window_bounds = array<i64: 4, 8>}, {pipeline_mode = #tpu.pipeline_mode<synchronous>, transform_indices = @transform_6, window_bounds = array<i64: 1, 32>}, {pipeline_mode = #tpu.pipeline_mode<synchronous>, transform_indices = @transform_7, window_bounds = array<i64: 1, 32>}, {pipeline_mode = #tpu.pipeline_mode<synchronous>, transform_indices = @transform_8, window_bounds = array<i64: 1, 32>}, {pipeline_mode = #tpu.pipeline_mode<synchronous>, transform_indices = @transform_9, window_bounds = array<i64: 1, 32>}, {pipeline_mode = #tpu.pipeline_mode<synchronous>, transform_indices = @transform_10, window_bounds = array<i64: 32, 8>}, {pipeline_mode = #tpu.pipeline_mode<synchronous>, transform_indices = @transform_11, window_bounds = array<i64: 1, 8>}, {pipeline_mode = #tpu.pipeline_mode<synchronous>, transform_indices = @transform_12, window_bounds = array<i64: 1, 8>}, {pipeline_mode = #tpu.pipeline_mode<synchronous>, transform_indices = @transform_13, window_bounds = array<i64: 1, 8>}, {pipeline_mode = #tpu.pipeline_mode<synchronous>, transform_indices = @transform_14, window_bounds = array<i64: 1, 8>}, {pipeline_mode = #tpu.pipeline_mode<synchronous>, transform_indices = @transform_15, window_bounds = array<i64: 1, 8>}, {pipeline_mode = #tpu.pipeline_mode<synchronous>, transform_indices = @transform_16, window_bounds = array<i64: 1, 8>}, {pipeline_mode = #tpu.pipeline_mode<synchronous>, transform_indices = @transform_17, window_bounds = array<i64: 8, 4>}, {pipeline_mode = #tpu.pipeline_mode<synchronous>, transform_indices = @transform_18, window_bounds = array<i64: 1, 4>}, {pipeline_mode = #tpu.pipeline_mode<synchronous>, transform_indices = @transform_19, window_bounds = array<i64: 1, 4>}, {pipeline_mode = #tpu.pipeline_mode<synchronous>, transform_indices = @transform_20, window_bounds = array<i64: 1, 4>}, {pipeline_mode = #tpu.pipeline_mode<synchronous>, transform_indices = @transform_21, window_bounds = array<i64: 8, 4>}, {pipeline_mode = #tpu.pipeline_mode<synchronous>, transform_indices = @transform_22, window_bounds = array<i64: 1, 4>}, {transform_indices = @transform_23, window_bounds = array<i64: 1, 16, 4>}]} {
    %c0 = arith.constant 0 : index
    %c0_0 = arith.constant 0 : index
    %c0_1 = arith.constant 0 : index
    %0 = vector.load %arg2[%c0, %c0_0, %c0_1] : memref<1x16x8xf32, #tpu.memory_space<vmem>>, vector<1x16x8xf32>
    %1 = vector.shape_cast %0 : vector<1x16x8xf32> to vector<16x8xf32>
    %c0_2 = arith.constant 0 : index
    %c0_3 = arith.constant 0 : index
    %c0_4 = arith.constant 0 : index
    %2 = vector.load %arg4[%c0_2, %c0_3, %c0_4] : memref<1x16x1xf32, #tpu.memory_space<vmem>>, vector<1x16x1xf32>
    %3 = vector.shape_cast %2 : vector<1x16x1xf32> to vector<16x1xf32>
    %cst = arith.constant dense<0.000000e+00> : vector<1xf32>
    %4 = vector.multi_reduction <add>, %3, %cst [0] : vector<16x1xf32> to vector<1xf32>
    %5 = vector.shape_cast %4 : vector<1xf32> to vector<1x1xf32>
    %cst_5 = arith.constant 1.000000e+00 : f32
    %6 = vector.broadcast %cst_5 : f32 to vector<1x1xf32>
    %7 = arith.divf %6, %5 : vector<1x1xf32>
    %c0_6 = arith.constant 0 : index
    %c0_7 = arith.constant 0 : index
    %c0_8 = arith.constant 0 : index
    %8 = vector.load %arg3[%c0_6, %c0_7, %c0_8] : memref<1x16x16xi8, #tpu.memory_space<vmem>>, vector<1x16x16xi8>
    %9 = vector.shape_cast %8 : vector<1x16x16xi8> to vector<16x16xi8>
    %10 = arith.sitofp %9 : vector<16x16xi8> to vector<16x16xf32>
    %cst_9 = arith.constant 0.000000e+00 : f32
    %11 = vector.broadcast %cst_9 : f32 to vector<16x16xf32>
    %12 = arith.cmpf ogt, %10, %11 : vector<16x16xf32>
    %cst_10 = arith.constant 0.000000e+00 : f32
    %cst_11 = arith.constant -1.000000e+30 : f32
    %13 = vector.broadcast %cst_10 : f32 to vector<16x16xf32>
    %14 = vector.broadcast %cst_11 : f32 to vector<16x16xf32>
    %15 = arith.select %12, %13, %14 : vector<16x16xi1>, vector<16x16xf32>
    %16 = arith.truncf %1 : vector<16x8xf32> to vector<16x8xbf16>
    %c0_12 = arith.constant 0 : index
    %c0_13 = arith.constant 0 : index
    %17 = vector.load %arg23[%c0_12, %c0_13] : memref<8x4xf32, #tpu.memory_space<vmem>>, vector<8x4xf32>
    %18 = arith.truncf %17 : vector<8x4xf32> to vector<8x4xbf16>
    %cst_14 = arith.constant dense<0.000000e+00> : vector<16x4xf32>
    %19 = tpu.matmul %16, %18, %cst_14 {dimension_numbers = #tpu.dot_dimension_numbers<[1], [0], [0], [1], [0, 0, 1, 1], [], []>} : vector<16x8xbf16>, vector<8x4xbf16>, vector<16x4xf32> -> vector<16x4xf32>
    %c0_15 = arith.constant 0 : index
    %c0_16 = arith.constant 0 : index
    %20 = vector.load %arg24[%c0_15, %c0_16] : memref<1x4xf32, #tpu.memory_space<vmem>>, vector<1x4xf32>
    %21 = vector.broadcast %20 : vector<1x4xf32> to vector<16x4xf32>
    %22 = arith.addf %19, %21 : vector<16x4xf32>
    %c0_17 = arith.constant 0 : index
    %c0_18 = arith.constant 0 : index
    %23 = vector.load %arg5[%c0_17, %c0_18] : memref<8x32xf32, #tpu.memory_space<vmem>>, vector<8x32xf32>
    %c0_19 = arith.constant 0 : index
    %c0_20 = arith.constant 0 : index
    %24 = vector.load %arg6[%c0_19, %c0_20] : memref<4x8xf32, #tpu.memory_space<vmem>>, vector<4x8xf32>
    %c0_21 = arith.constant 0 : index
    %c0_22 = arith.constant 0 : index
    %25 = vector.load %arg7[%c0_21, %c0_22] : memref<4x8xf32, #tpu.memory_space<vmem>>, vector<4x8xf32>
    %c0_23 = arith.constant 0 : index
    %c0_24 = arith.constant 0 : index
    %26 = vector.load %arg8[%c0_23, %c0_24] : memref<1x32xf32, #tpu.memory_space<vmem>>, vector<1x32xf32>
    %27 = arith.truncf %1 : vector<16x8xf32> to vector<16x8xbf16>
    %28 = arith.truncf %23 : vector<8x32xf32> to vector<8x32xbf16>
    %cst_25 = arith.constant dense<0.000000e+00> : vector<16x32xf32>
    %29 = tpu.matmul %27, %28, %cst_25 {dimension_numbers = #tpu.dot_dimension_numbers<[1], [0], [0], [1], [0, 0, 1, 1], [], []>} : vector<16x8xbf16>, vector<8x32xbf16>, vector<16x32xf32> -> vector<16x32xf32>
    %30 = vector.extract_strided_slice %29 {offsets = [0, 0], sizes = [16, 8], strides = [1, 1]} : vector<16x32xf32> to vector<16x8xf32>
    %31 = vector.extract_strided_slice %24 {offsets = [0, 0], sizes = [1, 8], strides = [1, 1]} : vector<4x8xf32> to vector<1x8xf32>
    %32 = vector.broadcast %31 : vector<1x8xf32> to vector<16x8xf32>
    %33 = arith.mulf %30, %32 : vector<16x8xf32>
    %cst_26 = arith.constant dense<0.000000e+00> : vector<16xf32>
    %34 = vector.multi_reduction <add>, %33, %cst_26 [1] : vector<16x8xf32> to vector<16xf32>
    %35 = vector.shape_cast %34 : vector<16xf32> to vector<16x1xf32>
    %36 = vector.extract_strided_slice %25 {offsets = [0, 0], sizes = [1, 8], strides = [1, 1]} : vector<4x8xf32> to vector<1x8xf32>
    %37 = vector.broadcast %36 : vector<1x8xf32> to vector<16x8xf32>
    %38 = arith.mulf %30, %37 : vector<16x8xf32>
    %cst_27 = arith.constant dense<0.000000e+00> : vector<16xf32>
    %39 = vector.multi_reduction <add>, %38, %cst_27 [1] : vector<16x8xf32> to vector<16xf32>
    %40 = vector.shape_cast %39 : vector<16xf32> to vector<16x1xf32>
    %41 = tpu.transpose %35, [1, 0] : vector<16x1xf32> -> vector<1x16xf32>
    %42 = vector.broadcast %40 : vector<16x1xf32> to vector<16x16xf32>
    %43 = vector.broadcast %41 : vector<1x16xf32> to vector<16x16xf32>
    %44 = arith.addf %42, %43 : vector<16x16xf32>
    %cst_28 = arith.constant 0.000000e+00 : f32
    %45 = vector.broadcast %cst_28 : f32 to vector<16x16xf32>
    %46 = arith.cmpf ogt, %44, %45 : vector<16x16xf32>
    %cst_29 = arith.constant 2.000000e-01 : f32
    %47 = vector.broadcast %cst_29 : f32 to vector<16x16xf32>
    %48 = arith.mulf %47, %44 : vector<16x16xf32>
    %49 = arith.select %46, %44, %48 : vector<16x16xi1>, vector<16x16xf32>
    %50 = arith.addf %49, %15 : vector<16x16xf32>
    %cst_30 = arith.constant dense<0xFF800000> : vector<16xf32>
    %51 = vector.multi_reduction <maximumf>, %50, %cst_30 [1] : vector<16x16xf32> to vector<16xf32>
    %52 = vector.shape_cast %51 : vector<16xf32> to vector<16x1xf32>
    %53 = vector.broadcast %52 : vector<16x1xf32> to vector<16x16xf32>
    %54 = arith.subf %50, %53 : vector<16x16xf32>
    %55 = math.exp %54 : vector<16x16xf32>
    %cst_31 = arith.constant dense<0.000000e+00> : vector<16xf32>
    %56 = vector.multi_reduction <add>, %55, %cst_31 [1] : vector<16x16xf32> to vector<16xf32>
    %57 = vector.shape_cast %56 : vector<16xf32> to vector<16x1xf32>
    %58 = tpu.reciprocal %57 {approx = true} : vector<16x1xf32> -> vector<16x1xf32>
    %59 = vector.broadcast %58 : vector<16x1xf32> to vector<16x16xf32>
    %60 = arith.mulf %55, %59 : vector<16x16xf32>
    %61 = arith.truncf %60 : vector<16x16xf32> to vector<16x16xbf16>
    %62 = arith.truncf %30 : vector<16x8xf32> to vector<16x8xbf16>
    %cst_32 = arith.constant dense<0.000000e+00> : vector<16x8xf32>
    %63 = tpu.matmul %61, %62, %cst_32 {dimension_numbers = #tpu.dot_dimension_numbers<[1], [0], [0], [1], [0, 0, 1, 1], [], []>} : vector<16x16xbf16>, vector<16x8xbf16>, vector<16x8xf32> -> vector<16x8xf32>
    %c0_33 = arith.constant 0 : index
    %c0_34 = arith.constant 0 : index
    %64 = vector.load %arg26[%c0_33, %c0_34] : memref<16x32xf32, #tpu.memory_space<vmem>>, vector<16x8xf32>
    tpu.vector_store %arg26[%c0_33, %c0_34], %63 {strides = array<i32>} : memref<16x32xf32, #tpu.memory_space<vmem>>, vector<16x8xf32>,
    %65 = vector.extract_strided_slice %29 {offsets = [0, 8], sizes = [16, 8], strides = [1, 1]} : vector<16x32xf32> to vector<16x8xf32>
    %66 = vector.extract_strided_slice %24 {offsets = [1, 0], sizes = [1, 8], strides = [1, 1]} : vector<4x8xf32> to vector<1x8xf32>
    %67 = vector.broadcast %66 : vector<1x8xf32> to vector<16x8xf32>
    %68 = arith.mulf %65, %67 : vector<16x8xf32>
    %cst_35 = arith.constant dense<0.000000e+00> : vector<16xf32>
    %69 = vector.multi_reduction <add>, %68, %cst_35 [1] : vector<16x8xf32> to vector<16xf32>
    %70 = vector.shape_cast %69 : vector<16xf32> to vector<16x1xf32>
    %71 = vector.extract_strided_slice %25 {offsets = [1, 0], sizes = [1, 8], strides = [1, 1]} : vector<4x8xf32> to vector<1x8xf32>
    %72 = vector.broadcast %71 : vector<1x8xf32> to vector<16x8xf32>
    %73 = arith.mulf %65, %72 : vector<16x8xf32>
    %cst_36 = arith.constant dense<0.000000e+00> : vector<16xf32>
    %74 = vector.multi_reduction <add>, %73, %cst_36 [1] : vector<16x8xf32> to vector<16xf32>
    %75 = vector.shape_cast %74 : vector<16xf32> to vector<16x1xf32>
    %76 = tpu.transpose %70, [1, 0] : vector<16x1xf32> -> vector<1x16xf32>
    %77 = vector.broadcast %75 : vector<16x1xf32> to vector<16x16xf32>
    %78 = vector.broadcast %76 : vector<1x16xf32> to vector<16x16xf32>
    %79 = arith.addf %77, %78 : vector<16x16xf32>
    %cst_37 = arith.constant 0.000000e+00 : f32
    %80 = vector.broadcast %cst_37 : f32 to vector<16x16xf32>
    %81 = arith.cmpf ogt, %79, %80 : vector<16x16xf32>
    %cst_38 = arith.constant 2.000000e-01 : f32
    %82 = vector.broadcast %cst_38 : f32 to vector<16x16xf32>
    %83 = arith.mulf %82, %79 : vector<16x16xf32>
    %84 = arith.select %81, %79, %83 : vector<16x16xi1>, vector<16x16xf32>
    %85 = arith.addf %84, %15 : vector<16x16xf32>
    %cst_39 = arith.constant dense<0xFF800000> : vector<16xf32>
    %86 = vector.multi_reduction <maximumf>, %85, %cst_39 [1] : vector<16x16xf32> to vector<16xf32>
    %87 = vector.shape_cast %86 : vector<16xf32> to vector<16x1xf32>
    %88 = vector.broadcast %87 : vector<16x1xf32> to vector<16x16xf32>
    %89 = arith.subf %85, %88 : vector<16x16xf32>
    %90 = math.exp %89 : vector<16x16xf32>
    %cst_40 = arith.constant dense<0.000000e+00> : vector<16xf32>
    %91 = vector.multi_reduction <add>, %90, %cst_40 [1] : vector<16x16xf32> to vector<16xf32>
    %92 = vector.shape_cast %91 : vector<16xf32> to vector<16x1xf32>
    %93 = tpu.reciprocal %92 {approx = true} : vector<16x1xf32> -> vector<16x1xf32>
    %94 = vector.broadcast %93 : vector<16x1xf32> to vector<16x16xf32>
    %95 = arith.mulf %90, %94 : vector<16x16xf32>
    %96 = arith.truncf %95 : vector<16x16xf32> to vector<16x16xbf16>
    %97 = arith.truncf %65 : vector<16x8xf32> to vector<16x8xbf16>
    %cst_41 = arith.constant dense<0.000000e+00> : vector<16x8xf32>
    %98 = tpu.matmul %96, %97, %cst_41 {dimension_numbers = #tpu.dot_dimension_numbers<[1], [0], [0], [1], [0, 0, 1, 1], [], []>} : vector<16x16xbf16>, vector<16x8xbf16>, vector<16x8xf32> -> vector<16x8xf32>
    %c0_42 = arith.constant 0 : index
    %c8 = arith.constant 8 : index
    %99 = vector.load %arg26[%c0_42, %c8] : memref<16x32xf32, #tpu.memory_space<vmem>>, vector<16x8xf32>
    tpu.vector_store %arg26[%c0_42, %c8], %98 {strides = array<i32>} : memref<16x32xf32, #tpu.memory_space<vmem>>, vector<16x8xf32>,
    %100 = vector.extract_strided_slice %29 {offsets = [0, 16], sizes = [16, 8], strides = [1, 1]} : vector<16x32xf32> to vector<16x8xf32>
    %101 = vector.extract_strided_slice %24 {offsets = [2, 0], sizes = [1, 8], strides = [1, 1]} : vector<4x8xf32> to vector<1x8xf32>
    %102 = vector.broadcast %101 : vector<1x8xf32> to vector<16x8xf32>
    %103 = arith.mulf %100, %102 : vector<16x8xf32>
    %cst_43 = arith.constant dense<0.000000e+00> : vector<16xf32>
    %104 = vector.multi_reduction <add>, %103, %cst_43 [1] : vector<16x8xf32> to vector<16xf32>
    %105 = vector.shape_cast %104 : vector<16xf32> to vector<16x1xf32>
    %106 = vector.extract_strided_slice %25 {offsets = [2, 0], sizes = [1, 8], strides = [1, 1]} : vector<4x8xf32> to vector<1x8xf32>
    %107 = vector.broadcast %106 : vector<1x8xf32> to vector<16x8xf32>
    %108 = arith.mulf %100, %107 : vector<16x8xf32>
    %cst_44 = arith.constant dense<0.000000e+00> : vector<16xf32>
    %109 = vector.multi_reduction <add>, %108, %cst_44 [1] : vector<16x8xf32> to vector<16xf32>
    %110 = vector.shape_cast %109 : vector<16xf32> to vector<16x1xf32>
    %111 = tpu.transpose %105, [1, 0] : vector<16x1xf32> -> vector<1x16xf32>
    %112 = vector.broadcast %110 : vector<16x1xf32> to vector<16x16xf32>
    %113 = vector.broadcast %111 : vector<1x16xf32> to vector<16x16xf32>
    %114 = arith.addf %112, %113 : vector<16x16xf32>
    %cst_45 = arith.constant 0.000000e+00 : f32
    %115 = vector.broadcast %cst_45 : f32 to vector<16x16xf32>
    %116 = arith.cmpf ogt, %114, %115 : vector<16x16xf32>
    %cst_46 = arith.constant 2.000000e-01 : f32
    %117 = vector.broadcast %cst_46 : f32 to vector<16x16xf32>
    %118 = arith.mulf %117, %114 : vector<16x16xf32>
    %119 = arith.select %116, %114, %118 : vector<16x16xi1>, vector<16x16xf32>
    %120 = arith.addf %119, %15 : vector<16x16xf32>
    %cst_47 = arith.constant dense<0xFF800000> : vector<16xf32>
    %121 = vector.multi_reduction <maximumf>, %120, %cst_47 [1] : vector<16x16xf32> to vector<16xf32>
    %122 = vector.shape_cast %121 : vector<16xf32> to vector<16x1xf32>
    %123 = vector.broadcast %122 : vector<16x1xf32> to vector<16x16xf32>
    %124 = arith.subf %120, %123 : vector<16x16xf32>
    %125 = math.exp %124 : vector<16x16xf32>
    %cst_48 = arith.constant dense<0.000000e+00> : vector<16xf32>
    %126 = vector.multi_reduction <add>, %125, %cst_48 [1] : vector<16x16xf32> to vector<16xf32>
    %127 = vector.shape_cast %126 : vector<16xf32> to vector<16x1xf32>
    %128 = tpu.reciprocal %127 {approx = true} : vector<16x1xf32> -> vector<16x1xf32>
    %129 = vector.broadcast %128 : vector<16x1xf32> to vector<16x16xf32>
    %130 = arith.mulf %125, %129 : vector<16x16xf32>
    %131 = arith.truncf %130 : vector<16x16xf32> to vector<16x16xbf16>
    %132 = arith.truncf %100 : vector<16x8xf32> to vector<16x8xbf16>
    %cst_49 = arith.constant dense<0.000000e+00> : vector<16x8xf32>
    %133 = tpu.matmul %131, %132, %cst_49 {dimension_numbers = #tpu.dot_dimension_numbers<[1], [0], [0], [1], [0, 0, 1, 1], [], []>} : vector<16x16xbf16>, vector<16x8xbf16>, vector<16x8xf32> -> vector<16x8xf32>
    %c0_50 = arith.constant 0 : index
    %c16 = arith.constant 16 : index
    %134 = vector.load %arg26[%c0_50, %c16] : memref<16x32xf32, #tpu.memory_space<vmem>>, vector<16x8xf32>
    tpu.vector_store %arg26[%c0_50, %c16], %133 {strides = array<i32>} : memref<16x32xf32, #tpu.memory_space<vmem>>, vector<16x8xf32>,
    %135 = vector.extract_strided_slice %29 {offsets = [0, 24], sizes = [16, 8], strides = [1, 1]} : vector<16x32xf32> to vector<16x8xf32>
    %136 = vector.extract_strided_slice %24 {offsets = [3, 0], sizes = [1, 8], strides = [1, 1]} : vector<4x8xf32> to vector<1x8xf32>
    %137 = vector.broadcast %136 : vector<1x8xf32> to vector<16x8xf32>
    %138 = arith.mulf %135, %137 : vector<16x8xf32>
    %cst_51 = arith.constant dense<0.000000e+00> : vector<16xf32>
    %139 = vector.multi_reduction <add>, %138, %cst_51 [1] : vector<16x8xf32> to vector<16xf32>
    %140 = vector.shape_cast %139 : vector<16xf32> to vector<16x1xf32>
    %141 = vector.extract_strided_slice %25 {offsets = [3, 0], sizes = [1, 8], strides = [1, 1]} : vector<4x8xf32> to vector<1x8xf32>
    %142 = vector.broadcast %141 : vector<1x8xf32> to vector<16x8xf32>
    %143 = arith.mulf %135, %142 : vector<16x8xf32>
    %cst_52 = arith.constant dense<0.000000e+00> : vector<16xf32>
    %144 = vector.multi_reduction <add>, %143, %cst_52 [1] : vector<16x8xf32> to vector<16xf32>
    %145 = vector.shape_cast %144 : vector<16xf32> to vector<16x1xf32>
    %146 = tpu.transpose %140, [1, 0] : vector<16x1xf32> -> vector<1x16xf32>
    %147 = vector.broadcast %145 : vector<16x1xf32> to vector<16x16xf32>
    %148 = vector.broadcast %146 : vector<1x16xf32> to vector<16x16xf32>
    %149 = arith.addf %147, %148 : vector<16x16xf32>
    %cst_53 = arith.constant 0.000000e+00 : f32
    %150 = vector.broadcast %cst_53 : f32 to vector<16x16xf32>
    %151 = arith.cmpf ogt, %149, %150 : vector<16x16xf32>
    %cst_54 = arith.constant 2.000000e-01 : f32
    %152 = vector.broadcast %cst_54 : f32 to vector<16x16xf32>
    %153 = arith.mulf %152, %149 : vector<16x16xf32>
    %154 = arith.select %151, %149, %153 : vector<16x16xi1>, vector<16x16xf32>
    %155 = arith.addf %154, %15 : vector<16x16xf32>
    %cst_55 = arith.constant dense<0xFF800000> : vector<16xf32>
    %156 = vector.multi_reduction <maximumf>, %155, %cst_55 [1] : vector<16x16xf32> to vector<16xf32>
    %157 = vector.shape_cast %156 : vector<16xf32> to vector<16x1xf32>
    %158 = vector.broadcast %157 : vector<16x1xf32> to vector<16x16xf32>
    %159 = arith.subf %155, %158 : vector<16x16xf32>
    %160 = math.exp %159 : vector<16x16xf32>
    %cst_56 = arith.constant dense<0.000000e+00> : vector<16xf32>
    %161 = vector.multi_reduction <add>, %160, %cst_56 [1] : vector<16x16xf32> to vector<16xf32>
    %162 = vector.shape_cast %161 : vector<16xf32> to vector<16x1xf32>
    %163 = tpu.reciprocal %162 {approx = true} : vector<16x1xf32> -> vector<16x1xf32>
    %164 = vector.broadcast %163 : vector<16x1xf32> to vector<16x16xf32>
    %165 = arith.mulf %160, %164 : vector<16x16xf32>
    %166 = arith.truncf %165 : vector<16x16xf32> to vector<16x16xbf16>
    %167 = arith.truncf %135 : vector<16x8xf32> to vector<16x8xbf16>
    %cst_57 = arith.constant dense<0.000000e+00> : vector<16x8xf32>
    %168 = tpu.matmul %166, %167, %cst_57 {dimension_numbers = #tpu.dot_dimension_numbers<[1], [0], [0], [1], [0, 0, 1, 1], [], []>} : vector<16x16xbf16>, vector<16x8xbf16>, vector<16x8xf32> -> vector<16x8xf32>
    %c0_58 = arith.constant 0 : index
    %c24 = arith.constant 24 : index
    %169 = vector.load %arg26[%c0_58, %c24] : memref<16x32xf32, #tpu.memory_space<vmem>>, vector<16x8xf32>
    tpu.vector_store %arg26[%c0_58, %c24], %168 {strides = array<i32>} : memref<16x32xf32, #tpu.memory_space<vmem>>, vector<16x8xf32>,
    %c0_59 = arith.constant 0 : index
    %c0_60 = arith.constant 0 : index
    %170 = vector.load %arg26[%c0_59, %c0_60] : memref<16x32xf32, #tpu.memory_space<vmem>>, vector<16x32xf32>
    %171 = vector.broadcast %26 : vector<1x32xf32> to vector<16x32xf32>
    %172 = arith.addf %170, %171 : vector<16x32xf32>
    %c0_61 = arith.constant 0 : index
    %c0_62 = arith.constant 0 : index
    %173 = vector.load %arg9[%c0_61, %c0_62] : memref<1x32xf32, #tpu.memory_space<vmem>>, vector<1x32xf32>
    %c0_63 = arith.constant 0 : index
    %c0_64 = arith.constant 0 : index
    %174 = vector.load %arg10[%c0_63, %c0_64] : memref<1x32xf32, #tpu.memory_space<vmem>>, vector<1x32xf32>
    %c0_65 = arith.constant 0 : index
    %c0_66 = arith.constant 0 : index
    %175 = vector.load %arg11[%c0_65, %c0_66] : memref<1x32xf32, #tpu.memory_space<vmem>>, vector<1x32xf32>
    %176 = vector.broadcast %3 : vector<16x1xf32> to vector<16x32xf32>
    %177 = arith.mulf %172, %176 : vector<16x32xf32>
    %cst_67 = arith.constant dense<0.000000e+00> : vector<32xf32>
    %178 = vector.multi_reduction <add>, %177, %cst_67 [0] : vector<16x32xf32> to vector<32xf32>
    %179 = vector.shape_cast %178 : vector<32xf32> to vector<1x32xf32>
    %180 = vector.broadcast %7 : vector<1x1xf32> to vector<1x32xf32>
    %181 = arith.mulf %179, %180 : vector<1x32xf32>
    %182 = arith.mulf %181, %175 : vector<1x32xf32>
    %183 = vector.broadcast %182 : vector<1x32xf32> to vector<16x32xf32>
    %184 = arith.subf %172, %183 : vector<16x32xf32>
    %185 = vector.broadcast %3 : vector<16x1xf32> to vector<16x32xf32>
    %186 = arith.mulf %184, %185 : vector<16x32xf32>
    %187 = arith.mulf %186, %186 : vector<16x32xf32>
    %cst_68 = arith.constant dense<0.000000e+00> : vector<32xf32>
    %188 = vector.multi_reduction <add>, %187, %cst_68 [0] : vector<16x32xf32> to vector<32xf32>
    %189 = vector.shape_cast %188 : vector<32xf32> to vector<1x32xf32>
    %190 = vector.broadcast %7 : vector<1x1xf32> to vector<1x32xf32>
    %191 = arith.mulf %189, %190 : vector<1x32xf32>
    %cst_69 = arith.constant 9.99999974E-6 : f32
    %192 = vector.broadcast %cst_69 : f32 to vector<1x32xf32>
    %193 = arith.addf %191, %192 : vector<1x32xf32>
    %194 = math.rsqrt %193 : vector<1x32xf32>
    %195 = vector.broadcast %194 : vector<1x32xf32> to vector<16x32xf32>
    %196 = arith.mulf %184, %195 : vector<16x32xf32>
    %197 = vector.broadcast %173 : vector<1x32xf32> to vector<16x32xf32>
    %198 = arith.mulf %196, %197 : vector<16x32xf32>
    %199 = vector.broadcast %174 : vector<1x32xf32> to vector<16x32xf32>
    %200 = arith.addf %198, %199 : vector<16x32xf32>
    %cst_70 = arith.constant 0.000000e+00 : f32
    %201 = vector.broadcast %cst_70 : f32 to vector<16x32xf32>
    %202 = arith.cmpf ogt, %200, %201 : vector<16x32xf32>
    %cst_71 = arith.constant 0.000000e+00 : f32
    %203 = vector.broadcast %cst_71 : f32 to vector<16x32xf32>
    %204 = arith.minimumf %200, %203 : vector<16x32xf32>
    %205 = math.exp %204 : vector<16x32xf32>
    %cst_72 = arith.constant 1.000000e+00 : f32
    %206 = vector.broadcast %cst_72 : f32 to vector<16x32xf32>
    %207 = arith.subf %205, %206 : vector<16x32xf32>
    %208 = arith.select %202, %200, %207 : vector<16x32xi1>, vector<16x32xf32>
    %c0_73 = arith.constant 0 : index
    %c0_74 = arith.constant 0 : index
    %209 = vector.load %arg12[%c0_73, %c0_74] : memref<32x8xf32, #tpu.memory_space<vmem>>, vector<32x8xf32>
    %c0_75 = arith.constant 0 : index
    %c0_76 = arith.constant 0 : index
    %210 = vector.load %arg13[%c0_75, %c0_76] : memref<1x8xf32, #tpu.memory_space<vmem>>, vector<1x8xf32>
    %c0_77 = arith.constant 0 : index
    %c0_78 = arith.constant 0 : index
    %211 = vector.load %arg14[%c0_77, %c0_78] : memref<1x8xf32, #tpu.memory_space<vmem>>, vector<1x8xf32>
    %c0_79 = arith.constant 0 : index
    %c0_80 = arith.constant 0 : index
    %212 = vector.load %arg15[%c0_79, %c0_80] : memref<1x8xf32, #tpu.memory_space<vmem>>, vector<1x8xf32>
    %213 = arith.truncf %208 : vector<16x32xf32> to vector<16x32xbf16>
    %214 = arith.truncf %209 : vector<32x8xf32> to vector<32x8xbf16>
    %cst_81 = arith.constant dense<0.000000e+00> : vector<16x8xf32>
    %215 = tpu.matmul %213, %214, %cst_81 {dimension_numbers = #tpu.dot_dimension_numbers<[1], [0], [0], [1], [0, 0, 1, 1], [], []>} : vector<16x32xbf16>, vector<32x8xbf16>, vector<16x8xf32> -> vector<16x8xf32>
    %216 = vector.broadcast %210 : vector<1x8xf32> to vector<16x8xf32>
    %217 = arith.mulf %215, %216 : vector<16x8xf32>
    %cst_82 = arith.constant dense<0.000000e+00> : vector<16xf32>
    %218 = vector.multi_reduction <add>, %217, %cst_82 [1] : vector<16x8xf32> to vector<16xf32>
    %219 = vector.shape_cast %218 : vector<16xf32> to vector<16x1xf32>
    %220 = vector.broadcast %211 : vector<1x8xf32> to vector<16x8xf32>
    %221 = arith.mulf %215, %220 : vector<16x8xf32>
    %cst_83 = arith.constant dense<0.000000e+00> : vector<16xf32>
    %222 = vector.multi_reduction <add>, %221, %cst_83 [1] : vector<16x8xf32> to vector<16xf32>
    %223 = vector.shape_cast %222 : vector<16xf32> to vector<16x1xf32>
    %224 = tpu.transpose %219, [1, 0] : vector<16x1xf32> -> vector<1x16xf32>
    %225 = vector.broadcast %223 : vector<16x1xf32> to vector<16x16xf32>
    %226 = vector.broadcast %224 : vector<1x16xf32> to vector<16x16xf32>
    %227 = arith.addf %225, %226 : vector<16x16xf32>
    %cst_84 = arith.constant 0.000000e+00 : f32
    %228 = vector.broadcast %cst_84 : f32 to vector<16x16xf32>
    %229 = arith.cmpf ogt, %227, %228 : vector<16x16xf32>
    %cst_85 = arith.constant 2.000000e-01 : f32
    %230 = vector.broadcast %cst_85 : f32 to vector<16x16xf32>
    %231 = arith.mulf %230, %227 : vector<16x16xf32>
    %232 = arith.select %229, %227, %231 : vector<16x16xi1>, vector<16x16xf32>
    %233 = arith.addf %232, %15 : vector<16x16xf32>
    %cst_86 = arith.constant dense<0xFF800000> : vector<16xf32>
    %234 = vector.multi_reduction <maximumf>, %233, %cst_86 [1] : vector<16x16xf32> to vector<16xf32>
    %235 = vector.shape_cast %234 : vector<16xf32> to vector<16x1xf32>
    %236 = vector.broadcast %235 : vector<16x1xf32> to vector<16x16xf32>
    %237 = arith.subf %233, %236 : vector<16x16xf32>
    %238 = math.exp %237 : vector<16x16xf32>
    %cst_87 = arith.constant dense<0.000000e+00> : vector<16xf32>
    %239 = vector.multi_reduction <add>, %238, %cst_87 [1] : vector<16x16xf32> to vector<16xf32>
    %240 = vector.shape_cast %239 : vector<16xf32> to vector<16x1xf32>
    %241 = tpu.reciprocal %240 {approx = true} : vector<16x1xf32> -> vector<16x1xf32>
    %242 = vector.broadcast %241 : vector<16x1xf32> to vector<16x16xf32>
    %243 = arith.mulf %238, %242 : vector<16x16xf32>
    %244 = arith.truncf %243 : vector<16x16xf32> to vector<16x16xbf16>
    %245 = arith.truncf %215 : vector<16x8xf32> to vector<16x8xbf16>
    %cst_88 = arith.constant dense<0.000000e+00> : vector<16x8xf32>
    %246 = tpu.matmul %244, %245, %cst_88 {dimension_numbers = #tpu.dot_dimension_numbers<[1], [0], [0], [1], [0, 0, 1, 1], [], []>} : vector<16x16xbf16>, vector<16x8xbf16>, vector<16x8xf32> -> vector<16x8xf32>
    %247 = vector.broadcast %212 : vector<1x8xf32> to vector<16x8xf32>
    %248 = arith.addf %246, %247 : vector<16x8xf32>
    %c0_89 = arith.constant 0 : index
    %c0_90 = arith.constant 0 : index
    %249 = vector.load %arg16[%c0_89, %c0_90] : memref<1x8xf32, #tpu.memory_space<vmem>>, vector<1x8xf32>
    %c0_91 = arith.constant 0 : index
    %c0_92 = arith.constant 0 : index
    %250 = vector.load %arg17[%c0_91, %c0_92] : memref<1x8xf32, #tpu.memory_space<vmem>>, vector<1x8xf32>
    %c0_93 = arith.constant 0 : index
    %c0_94 = arith.constant 0 : index
    %251 = vector.load %arg18[%c0_93, %c0_94] : memref<1x8xf32, #tpu.memory_space<vmem>>, vector<1x8xf32>
    %252 = vector.broadcast %3 : vector<16x1xf32> to vector<16x8xf32>
    %253 = arith.mulf %248, %252 : vector<16x8xf32>
    %cst_95 = arith.constant dense<0.000000e+00> : vector<8xf32>
    %254 = vector.multi_reduction <add>, %253, %cst_95 [0] : vector<16x8xf32> to vector<8xf32>
    %255 = vector.shape_cast %254 : vector<8xf32> to vector<1x8xf32>
    %256 = vector.broadcast %7 : vector<1x1xf32> to vector<1x8xf32>
    %257 = arith.mulf %255, %256 : vector<1x8xf32>
    %258 = arith.mulf %257, %251 : vector<1x8xf32>
    %259 = vector.broadcast %258 : vector<1x8xf32> to vector<16x8xf32>
    %260 = arith.subf %248, %259 : vector<16x8xf32>
    %261 = vector.broadcast %3 : vector<16x1xf32> to vector<16x8xf32>
    %262 = arith.mulf %260, %261 : vector<16x8xf32>
    %263 = arith.mulf %262, %262 : vector<16x8xf32>
    %cst_96 = arith.constant dense<0.000000e+00> : vector<8xf32>
    %264 = vector.multi_reduction <add>, %263, %cst_96 [0] : vector<16x8xf32> to vector<8xf32>
    %265 = vector.shape_cast %264 : vector<8xf32> to vector<1x8xf32>
    %266 = vector.broadcast %7 : vector<1x1xf32> to vector<1x8xf32>
    %267 = arith.mulf %265, %266 : vector<1x8xf32>
    %cst_97 = arith.constant 9.99999974E-6 : f32
    %268 = vector.broadcast %cst_97 : f32 to vector<1x8xf32>
    %269 = arith.addf %267, %268 : vector<1x8xf32>
    %270 = math.rsqrt %269 : vector<1x8xf32>
    %271 = vector.broadcast %270 : vector<1x8xf32> to vector<16x8xf32>
    %272 = arith.mulf %260, %271 : vector<16x8xf32>
    %273 = vector.broadcast %249 : vector<1x8xf32> to vector<16x8xf32>
    %274 = arith.mulf %272, %273 : vector<16x8xf32>
    %275 = vector.broadcast %250 : vector<1x8xf32> to vector<16x8xf32>
    %276 = arith.addf %274, %275 : vector<16x8xf32>
    %cst_98 = arith.constant 0.000000e+00 : f32
    %277 = vector.broadcast %cst_98 : f32 to vector<16x8xf32>
    %278 = arith.cmpf ogt, %276, %277 : vector<16x8xf32>
    %cst_99 = arith.constant 0.000000e+00 : f32
    %279 = vector.broadcast %cst_99 : f32 to vector<16x8xf32>
    %280 = arith.minimumf %276, %279 : vector<16x8xf32>
    %281 = math.exp %280 : vector<16x8xf32>
    %cst_100 = arith.constant 1.000000e+00 : f32
    %282 = vector.broadcast %cst_100 : f32 to vector<16x8xf32>
    %283 = arith.subf %281, %282 : vector<16x8xf32>
    %284 = arith.select %278, %276, %283 : vector<16x8xi1>, vector<16x8xf32>
    %c0_101 = arith.constant 0 : index
    %c0_102 = arith.constant 0 : index
    %285 = vector.load %arg19[%c0_101, %c0_102] : memref<8x4xf32, #tpu.memory_space<vmem>>, vector<8x4xf32>
    %c0_103 = arith.constant 0 : index
    %c0_104 = arith.constant 0 : index
    %286 = vector.load %arg20[%c0_103, %c0_104] : memref<1x4xf32, #tpu.memory_space<vmem>>, vector<1x4xf32>
    %c0_105 = arith.constant 0 : index
    %c0_106 = arith.constant 0 : index
    %287 = vector.load %arg21[%c0_105, %c0_106] : memref<1x4xf32, #tpu.memory_space<vmem>>, vector<1x4xf32>
    %c0_107 = arith.constant 0 : index
    %c0_108 = arith.constant 0 : index
    %288 = vector.load %arg22[%c0_107, %c0_108] : memref<1x4xf32, #tpu.memory_space<vmem>>, vector<1x4xf32>
    %289 = arith.truncf %284 : vector<16x8xf32> to vector<16x8xbf16>
    %290 = arith.truncf %285 : vector<8x4xf32> to vector<8x4xbf16>
    %cst_109 = arith.constant dense<0.000000e+00> : vector<16x4xf32>
    %291 = tpu.matmul %289, %290, %cst_109 {dimension_numbers = #tpu.dot_dimension_numbers<[1], [0], [0], [1], [0, 0, 1, 1], [], []>} : vector<16x8xbf16>, vector<8x4xbf16>, vector<16x4xf32> -> vector<16x4xf32>
    %292 = vector.broadcast %286 : vector<1x4xf32> to vector<16x4xf32>
    %293 = arith.mulf %291, %292 : vector<16x4xf32>
    %cst_110 = arith.constant dense<0.000000e+00> : vector<16xf32>
    %294 = vector.multi_reduction <add>, %293, %cst_110 [1] : vector<16x4xf32> to vector<16xf32>
    %295 = vector.shape_cast %294 : vector<16xf32> to vector<16x1xf32>
    %296 = vector.broadcast %287 : vector<1x4xf32> to vector<16x4xf32>
    %297 = arith.mulf %291, %296 : vector<16x4xf32>
    %cst_111 = arith.constant dense<0.000000e+00> : vector<16xf32>
    %298 = vector.multi_reduction <add>, %297, %cst_111 [1] : vector<16x4xf32> to vector<16xf32>
    %299 = vector.shape_cast %298 : vector<16xf32> to vector<16x1xf32>
    %300 = tpu.transpose %295, [1, 0] : vector<16x1xf32> -> vector<1x16xf32>
    %301 = vector.broadcast %299 : vector<16x1xf32> to vector<16x16xf32>
    %302 = vector.broadcast %300 : vector<1x16xf32> to vector<16x16xf32>
    %303 = arith.addf %301, %302 : vector<16x16xf32>
    %cst_112 = arith.constant 0.000000e+00 : f32
    %304 = vector.broadcast %cst_112 : f32 to vector<16x16xf32>
    %305 = arith.cmpf ogt, %303, %304 : vector<16x16xf32>
    %cst_113 = arith.constant 2.000000e-01 : f32
    %306 = vector.broadcast %cst_113 : f32 to vector<16x16xf32>
    %307 = arith.mulf %306, %303 : vector<16x16xf32>
    %308 = arith.select %305, %303, %307 : vector<16x16xi1>, vector<16x16xf32>
    %309 = arith.addf %308, %15 : vector<16x16xf32>
    %cst_114 = arith.constant dense<0xFF800000> : vector<16xf32>
    %310 = vector.multi_reduction <maximumf>, %309, %cst_114 [1] : vector<16x16xf32> to vector<16xf32>
    %311 = vector.shape_cast %310 : vector<16xf32> to vector<16x1xf32>
    %312 = vector.broadcast %311 : vector<16x1xf32> to vector<16x16xf32>
    %313 = arith.subf %309, %312 : vector<16x16xf32>
    %314 = math.exp %313 : vector<16x16xf32>
    %cst_115 = arith.constant dense<0.000000e+00> : vector<16xf32>
    %315 = vector.multi_reduction <add>, %314, %cst_115 [1] : vector<16x16xf32> to vector<16xf32>
    %316 = vector.shape_cast %315 : vector<16xf32> to vector<16x1xf32>
    %317 = tpu.reciprocal %316 {approx = true} : vector<16x1xf32> -> vector<16x1xf32>
    %318 = vector.broadcast %317 : vector<16x1xf32> to vector<16x16xf32>
    %319 = arith.mulf %314, %318 : vector<16x16xf32>
    %320 = arith.truncf %319 : vector<16x16xf32> to vector<16x16xbf16>
    %321 = arith.truncf %291 : vector<16x4xf32> to vector<16x4xbf16>
    %cst_116 = arith.constant dense<0.000000e+00> : vector<16x4xf32>
    %322 = tpu.matmul %320, %321, %cst_116 {dimension_numbers = #tpu.dot_dimension_numbers<[1], [0], [0], [1], [0, 0, 1, 1], [], []>} : vector<16x16xbf16>, vector<16x4xbf16>, vector<16x4xf32> -> vector<16x4xf32>
    %323 = vector.broadcast %288 : vector<1x4xf32> to vector<16x4xf32>
    %324 = arith.addf %322, %323 : vector<16x4xf32>
    %325 = arith.index_cast %arg0 : i32 to index
    %326 = memref.load %arg1[%325] : memref<1xi32, #tpu.memory_space<smem>>
    %c0_i32 = arith.constant 0 : i32
    %327 = arith.cmpi sgt, %326, %c0_i32 : i32
    %328 = arith.extui %327 : i1 to i32
    %329 = arith.sitofp %328 : i32 to f32
    %330 = vector.broadcast %329 : f32 to vector<16x4xf32>
    %331 = arith.mulf %330, %324 : vector<16x4xf32>
    %332 = arith.addf %22, %331 : vector<16x4xf32>
    %c0_117 = arith.constant 0 : index
    %c0_118 = arith.constant 0 : index
    %c0_119 = arith.constant 0 : index
    %333 = vector.load %arg25[%c0_117, %c0_118, %c0_119] : memref<1x16x4xf32, #tpu.memory_space<vmem>>, vector<1x16x4xf32>
    %334 = vector.shape_cast %333 : vector<1x16x4xf32> to vector<16x4xf32>
    %335 = vector.shape_cast %332 : vector<16x4xf32> to vector<1x16x4xf32>
    tpu.vector_store %arg25[%c0_117, %c0_118, %c0_119], %335 {strides = array<i32>} : memref<1x16x4xf32, #tpu.memory_space<vmem>>, vector<1x16x4xf32>,
    return
  }
  func.func @transform_0(%arg0: i32, %arg1: memref<1xi32, #tpu.memory_space<smem>>) -> (i32, i32, i32) {
    %c0_i32 = arith.constant 0 : i32
    %c0_i32_0 = arith.constant 0 : i32
    %c0_i32_1 = arith.constant 0 : i32
    return %arg0, %c0_i32, %c0_i32_0 : i32, i32, i32
  }
  func.func @transform_1(%arg0: i32, %arg1: memref<1xi32, #tpu.memory_space<smem>>) -> (i32, i32, i32) {
    %c0_i32 = arith.constant 0 : i32
    %c0_i32_0 = arith.constant 0 : i32
    %c0_i32_1 = arith.constant 0 : i32
    return %arg0, %c0_i32, %c0_i32_0 : i32, i32, i32
  }
  func.func @transform_2(%arg0: i32, %arg1: memref<1xi32, #tpu.memory_space<smem>>) -> (i32, i32, i32) {
    %c0_i32 = arith.constant 0 : i32
    %c0_i32_0 = arith.constant 0 : i32
    %c0_i32_1 = arith.constant 0 : i32
    return %arg0, %c0_i32, %c0_i32_0 : i32, i32, i32
  }
  func.func @transform_3(%arg0: i32, %arg1: memref<1xi32, #tpu.memory_space<smem>>) -> (i32, i32) {
    %c0_i32 = arith.constant 0 : i32
    %c0_i32_0 = arith.constant 0 : i32
    %c0_i32_1 = arith.constant 0 : i32
    return %c0_i32, %c0_i32_0 : i32, i32
  }
  func.func @transform_4(%arg0: i32, %arg1: memref<1xi32, #tpu.memory_space<smem>>) -> (i32, i32) {
    %c0_i32 = arith.constant 0 : i32
    %c0_i32_0 = arith.constant 0 : i32
    %c0_i32_1 = arith.constant 0 : i32
    return %c0_i32, %c0_i32_0 : i32, i32
  }
  func.func @transform_5(%arg0: i32, %arg1: memref<1xi32, #tpu.memory_space<smem>>) -> (i32, i32) {
    %c0_i32 = arith.constant 0 : i32
    %c0_i32_0 = arith.constant 0 : i32
    %c0_i32_1 = arith.constant 0 : i32
    return %c0_i32, %c0_i32_0 : i32, i32
  }
  func.func @transform_6(%arg0: i32, %arg1: memref<1xi32, #tpu.memory_space<smem>>) -> (i32, i32) {
    %c0_i32 = arith.constant 0 : i32
    %c0_i32_0 = arith.constant 0 : i32
    %c0_i32_1 = arith.constant 0 : i32
    return %c0_i32, %c0_i32_0 : i32, i32
  }
  func.func @transform_7(%arg0: i32, %arg1: memref<1xi32, #tpu.memory_space<smem>>) -> (i32, i32) {
    %c0_i32 = arith.constant 0 : i32
    %c0_i32_0 = arith.constant 0 : i32
    %c0_i32_1 = arith.constant 0 : i32
    return %c0_i32, %c0_i32_0 : i32, i32
  }
  func.func @transform_8(%arg0: i32, %arg1: memref<1xi32, #tpu.memory_space<smem>>) -> (i32, i32) {
    %c0_i32 = arith.constant 0 : i32
    %c0_i32_0 = arith.constant 0 : i32
    %c0_i32_1 = arith.constant 0 : i32
    return %c0_i32, %c0_i32_0 : i32, i32
  }
  func.func @transform_9(%arg0: i32, %arg1: memref<1xi32, #tpu.memory_space<smem>>) -> (i32, i32) {
    %c0_i32 = arith.constant 0 : i32
    %c0_i32_0 = arith.constant 0 : i32
    %c0_i32_1 = arith.constant 0 : i32
    return %c0_i32, %c0_i32_0 : i32, i32
  }
  func.func @transform_10(%arg0: i32, %arg1: memref<1xi32, #tpu.memory_space<smem>>) -> (i32, i32) {
    %c0_i32 = arith.constant 0 : i32
    %c0_i32_0 = arith.constant 0 : i32
    %c0_i32_1 = arith.constant 0 : i32
    return %c0_i32, %c0_i32_0 : i32, i32
  }
  func.func @transform_11(%arg0: i32, %arg1: memref<1xi32, #tpu.memory_space<smem>>) -> (i32, i32) {
    %c0_i32 = arith.constant 0 : i32
    %c0_i32_0 = arith.constant 0 : i32
    %c0_i32_1 = arith.constant 0 : i32
    return %c0_i32, %c0_i32_0 : i32, i32
  }
  func.func @transform_12(%arg0: i32, %arg1: memref<1xi32, #tpu.memory_space<smem>>) -> (i32, i32) {
    %c0_i32 = arith.constant 0 : i32
    %c0_i32_0 = arith.constant 0 : i32
    %c0_i32_1 = arith.constant 0 : i32
    return %c0_i32, %c0_i32_0 : i32, i32
  }
  func.func @transform_13(%arg0: i32, %arg1: memref<1xi32, #tpu.memory_space<smem>>) -> (i32, i32) {
    %c0_i32 = arith.constant 0 : i32
    %c0_i32_0 = arith.constant 0 : i32
    %c0_i32_1 = arith.constant 0 : i32
    return %c0_i32, %c0_i32_0 : i32, i32
  }
  func.func @transform_14(%arg0: i32, %arg1: memref<1xi32, #tpu.memory_space<smem>>) -> (i32, i32) {
    %c0_i32 = arith.constant 0 : i32
    %c0_i32_0 = arith.constant 0 : i32
    %c0_i32_1 = arith.constant 0 : i32
    return %c0_i32, %c0_i32_0 : i32, i32
  }
  func.func @transform_15(%arg0: i32, %arg1: memref<1xi32, #tpu.memory_space<smem>>) -> (i32, i32) {
    %c0_i32 = arith.constant 0 : i32
    %c0_i32_0 = arith.constant 0 : i32
    %c0_i32_1 = arith.constant 0 : i32
    return %c0_i32, %c0_i32_0 : i32, i32
  }
  func.func @transform_16(%arg0: i32, %arg1: memref<1xi32, #tpu.memory_space<smem>>) -> (i32, i32) {
    %c0_i32 = arith.constant 0 : i32
    %c0_i32_0 = arith.constant 0 : i32
    %c0_i32_1 = arith.constant 0 : i32
    return %c0_i32, %c0_i32_0 : i32, i32
  }
  func.func @transform_17(%arg0: i32, %arg1: memref<1xi32, #tpu.memory_space<smem>>) -> (i32, i32) {
    %c0_i32 = arith.constant 0 : i32
    %c0_i32_0 = arith.constant 0 : i32
    %c0_i32_1 = arith.constant 0 : i32
    return %c0_i32, %c0_i32_0 : i32, i32
  }
  func.func @transform_18(%arg0: i32, %arg1: memref<1xi32, #tpu.memory_space<smem>>) -> (i32, i32) {
    %c0_i32 = arith.constant 0 : i32
    %c0_i32_0 = arith.constant 0 : i32
    %c0_i32_1 = arith.constant 0 : i32
    return %c0_i32, %c0_i32_0 : i32, i32
  }
  func.func @transform_19(%arg0: i32, %arg1: memref<1xi32, #tpu.memory_space<smem>>) -> (i32, i32) {
    %c0_i32 = arith.constant 0 : i32
    %c0_i32_0 = arith.constant 0 : i32
    %c0_i32_1 = arith.constant 0 : i32
    return %c0_i32, %c0_i32_0 : i32, i32
  }
  func.func @transform_20(%arg0: i32, %arg1: memref<1xi32, #tpu.memory_space<smem>>) -> (i32, i32) {
    %c0_i32 = arith.constant 0 : i32
    %c0_i32_0 = arith.constant 0 : i32
    %c0_i32_1 = arith.constant 0 : i32
    return %c0_i32, %c0_i32_0 : i32, i32
  }
  func.func @transform_21(%arg0: i32, %arg1: memref<1xi32, #tpu.memory_space<smem>>) -> (i32, i32) {
    %c0_i32 = arith.constant 0 : i32
    %c0_i32_0 = arith.constant 0 : i32
    %c0_i32_1 = arith.constant 0 : i32
    return %c0_i32, %c0_i32_0 : i32, i32
  }
  func.func @transform_22(%arg0: i32, %arg1: memref<1xi32, #tpu.memory_space<smem>>) -> (i32, i32) {
    %c0_i32 = arith.constant 0 : i32
    %c0_i32_0 = arith.constant 0 : i32
    %c0_i32_1 = arith.constant 0 : i32
    return %c0_i32, %c0_i32_0 : i32, i32
  }
  func.func @transform_23(%arg0: i32, %arg1: memref<1xi32, #tpu.memory_space<smem>>) -> (i32, i32, i32) {
    %c0_i32 = arith.constant 0 : i32
    %c0_i32_0 = arith.constant 0 : i32
    %c0_i32_1 = arith.constant 0 : i32
    return %arg0, %c0_i32, %c0_i32_0 : i32, i32, i32
  }
}

</mosaic_0001>

<llo_original>
// kernel: tpu_custom_call.1
$region0: #{tpu_custom_call.1}
  #allocation0 [shape = 'u32[]', space=smem, size = 0x4, offset = 0x4, fixed_abs, tag = 'smem constant byte address 0x4 - core index']
  #allocation1 [shape = 'u32[144,128]{1,0:T(1,128)}', space=vmem, size = 0x12000, scoped, tag = 'internal scratch']
  #allocation2 [shape = 'f32[16,32]{1,0:T(8,128)}', space=vmem, size = 0x2000, scoped, tag = 'scratch operand']
  #allocation3 [shape = 's32[1]{0}', space=sflag, size = 0x4, scoped, tag = 'scoped memory for tpu_custom_call.1']
  #allocation4 [shape = 's32[1]{0:T(128)S(6)}', space=smem, size = 0x200, scoped, tag = 'prefetched SMEM operand 0']
  %s0 = inlined_call_operand.<no memory space> [shape: s32[1], index: 0, kind: input, shape index: {}]
  %s1 = inlined_call_operand.vmem [shape: f32[1,16,8], index: 1, kind: input, shape index: {}]
  %s2 = inlined_call_operand.vmem [shape: s8[1,16,16], index: 2, kind: input, shape index: {}]
  %s3 = inlined_call_operand.vmem [shape: f32[1,16,1], index: 3, kind: input, shape index: {}]
  %s4 = inlined_call_operand.vmem [shape: f32[8,32], index: 4, kind: input, shape index: {}]
  %s5 = inlined_call_operand.vmem [shape: f32[4,8], index: 5, kind: input, shape index: {}]
  %s6 = inlined_call_operand.vmem [shape: f32[4,8], index: 6, kind: input, shape index: {}]
  %s7 = inlined_call_operand.vmem [shape: f32[1,32], index: 7, kind: input, shape index: {}]
  %s8 = inlined_call_operand.vmem [shape: f32[1,32], index: 8, kind: input, shape index: {}]
  %s9 = inlined_call_operand.vmem [shape: f32[1,32], index: 9, kind: input, shape index: {}]
  %s10 = inlined_call_operand.vmem [shape: f32[1,32], index: 10, kind: input, shape index: {}]
  %s11 = inlined_call_operand.vmem [shape: f32[32,8], index: 11, kind: input, shape index: {}]
  %s12 = inlined_call_operand.vmem [shape: f32[1,8], index: 12, kind: input, shape index: {}]
  %s13 = inlined_call_operand.vmem [shape: f32[1,8], index: 13, kind: input, shape index: {}]
  %s14 = inlined_call_operand.vmem [shape: f32[1,8], index: 14, kind: input, shape index: {}]
  %s15 = inlined_call_operand.vmem [shape: f32[1,8], index: 15, kind: input, shape index: {}]
  %s16 = inlined_call_operand.vmem [shape: f32[1,8], index: 16, kind: input, shape index: {}]
  %s17 = inlined_call_operand.vmem [shape: f32[1,8], index: 17, kind: input, shape index: {}]
  %s18 = inlined_call_operand.vmem [shape: f32[8,4], index: 18, kind: input, shape index: {}]
  %s19 = inlined_call_operand.vmem [shape: f32[1,4], index: 19, kind: input, shape index: {}]
  %s20 = inlined_call_operand.vmem [shape: f32[1,4], index: 20, kind: input, shape index: {}]
  %s21 = inlined_call_operand.vmem [shape: f32[1,4], index: 21, kind: input, shape index: {}]
  %s22 = inlined_call_operand.vmem [shape: f32[8,4], index: 22, kind: input, shape index: {}]
  %s23 = inlined_call_operand.vmem [shape: f32[1,4], index: 23, kind: input, shape index: {}]
  %s24 = inlined_call_operand.vmem [shape: f32[1,16,4], index: 24, kind: output, shape index: {}]
  %s25 = sld [smem:[#allocation0]]
  $region102: #{tpu_custom_call.1} parent=0
    _
  %s27 = ssub.s32 1, %s25
  %s28 = scalar_select 0, %s27, %s25
  %29 = sst [smem:[#allocation4]] %s0
  // Predicated region
  $region2: #{tpu_custom_call.1} parent=0 // pred_check
    _
  $region3: #{tpu_custom_call.1} parent=0 // pred_check_branch
    %31 = sbr.rel (0) target = $region5
  $region4: #{tpu_custom_call.1} parent=0 // pred_region
    _
  $region5: #{tpu_custom_call.1} parent=0 // pred_fallthru
    _
  // Predicated region
  $region6: #{tpu_custom_call.1} parent=0 // pred_check
    _
  $region7: #{tpu_custom_call.1} parent=0 // pred_check_branch
    %33 = sbr.rel (0) target = $region9
  $region8: #{tpu_custom_call.1} parent=0 // pred_region
    _
  $region9: #{tpu_custom_call.1} parent=0 // pred_fallthru
    _
  // Predicated region
  $region10: #{tpu_custom_call.1} parent=0 // pred_check
    _
  $region11: #{tpu_custom_call.1} parent=0 // pred_check_branch
    %35 = sbr.rel (0) target = $region13
  $region12: #{tpu_custom_call.1} parent=0 // pred_region
    _
  $region13: #{tpu_custom_call.1} parent=0 // pred_fallthru
    _
  // Predicated region
  $region14: #{tpu_custom_call.1} parent=0 // pred_check
    _
  $region15: #{tpu_custom_call.1} parent=0 // pred_check_branch
    %37 = sbr.rel (0) target = $region17
  $region16: #{tpu_custom_call.1} parent=0 // pred_region
    _
  $region17: #{tpu_custom_call.1} parent=0 // pred_fallthru
    _
  // Predicated region
  $region18: #{tpu_custom_call.1} parent=0 // pred_check
    _
  $region19: #{tpu_custom_call.1} parent=0 // pred_check_branch
    %39 = sbr.rel (0) target = $region21
  $region20: #{tpu_custom_call.1} parent=0 // pred_region
    _
  $region21: #{tpu_custom_call.1} parent=0 // pred_fallthru
    _
  // Predicated region
  $region22: #{tpu_custom_call.1} parent=0 // pred_check
    _
  $region23: #{tpu_custom_call.1} parent=0 // pred_check_branch
    %41 = sbr.rel (0) target = $region25
  $region24: #{tpu_custom_call.1} parent=0 // pred_region
    _
  $region25: #{tpu_custom_call.1} parent=0 // pred_fallthru
    _
  // Predicated region
  $region26: #{tpu_custom_call.1} parent=0 // pred_check
    _
  $region27: #{tpu_custom_call.1} parent=0 // pred_check_branch
    %43 = sbr.rel (0) target = $region29
  $region28: #{tpu_custom_call.1} parent=0 // pred_region
    _
  $region29: #{tpu_custom_call.1} parent=0 // pred_fallthru
    _
  // Predicated region
  $region30: #{tpu_custom_call.1} parent=0 // pred_check
    _
  $region31: #{tpu_custom_call.1} parent=0 // pred_check_branch
    %45 = sbr.rel (0) target = $region33
  $region32: #{tpu_custom_call.1} parent=0 // pred_region
    _
  $region33: #{tpu_custom_call.1} parent=0 // pred_fallthru
    _
  // Predicated region
  $region34: #{tpu_custom_call.1} parent=0 // pred_check
    _
  $region35: #{tpu_custom_call.1} parent=0 // pred_check_branch
    %47 = sbr.rel (0) target = $region37
  $region36: #{tpu_custom_call.1} parent=0 // pred_region
    _
  $region37: #{tpu_custom_call.1} parent=0 // pred_fallthru
    _
  // Predicated region
  $region38: #{tpu_custom_call.1} parent=0 // pred_check
    _
  $region39: #{tpu_custom_call.1} parent=0 // pred_check_branch
    %49 = sbr.rel (0) target = $region41
  $region40: #{tpu_custom_call.1} parent=0 // pred_region
    _
  $region41: #{tpu_custom_call.1} parent=0 // pred_fallthru
    _
  // Predicated region
  $region42: #{tpu_custom_call.1} parent=0 // pred_check
    _
  $region43: #{tpu_custom_call.1} parent=0 // pred_check_branch
    %51 = sbr.rel (0) target = $region45
  $region44: #{tpu_custom_call.1} parent=0 // pred_region
    _
  $region45: #{tpu_custom_call.1} parent=0 // pred_fallthru
    _
  // Predicated region
  $region46: #{tpu_custom_call.1} parent=0 // pred_check
    _
  $region47: #{tpu_custom_call.1} parent=0 // pred_check_branch
    %53 = sbr.rel (0) target = $region49
  $region48: #{tpu_custom_call.1} parent=0 // pred_region
    _
  $region49: #{tpu_custom_call.1} parent=0 // pred_fallthru
    _
  // Predicated region
  $region50: #{tpu_custom_call.1} parent=0 // pred_check
    _
  $region51: #{tpu_custom_call.1} parent=0 // pred_check_branch
    %55 = sbr.rel (0) target = $region53
  $region52: #{tpu_custom_call.1} parent=0 // pred_region
    _
  $region53: #{tpu_custom_call.1} parent=0 // pred_fallthru
    _
  // Predicated region
  $region54: #{tpu_custom_call.1} parent=0 // pred_check
    _
  $region55: #{tpu_custom_call.1} parent=0 // pred_check_branch
    %57 = sbr.rel (0) target = $region57
  $region56: #{tpu_custom_call.1} parent=0 // pred_region
    _
  $region57: #{tpu_custom_call.1} parent=0 // pred_fallthru
    _
  // Predicated region
  $region58: #{tpu_custom_call.1} parent=0 // pred_check
    _
  $region59: #{tpu_custom_call.1} parent=0 // pred_check_branch
    %59 = sbr.rel (0) target = $region61
  $region60: #{tpu_custom_call.1} parent=0 // pred_region
    _
  $region61: #{tpu_custom_call.1} parent=0 // pred_fallthru
    _
  // Predicated region
  $region62: #{tpu_custom_call.1} parent=0 // pred_check
    _
  $region63: #{tpu_custom_call.1} parent=0 // pred_check_branch
    %61 = sbr.rel (0) target = $region65
  $region64: #{tpu_custom_call.1} parent=0 // pred_region
    _
  $region65: #{tpu_custom_call.1} parent=0 // pred_fallthru
    _
  // Predicated region
  $region66: #{tpu_custom_call.1} parent=0 // pred_check
    _
  $region67: #{tpu_custom_call.1} parent=0 // pred_check_branch
    %63 = sbr.rel (0) target = $region69
  $region68: #{tpu_custom_call.1} parent=0 // pred_region
    _
  $region69: #{tpu_custom_call.1} parent=0 // pred_fallthru
    _
  // Predicated region
  $region70: #{tpu_custom_call.1} parent=0 // pred_check
    _
  $region71: #{tpu_custom_call.1} parent=0 // pred_check_branch
    %65 = sbr.rel (0) target = $region73
  $region72: #{tpu_custom_call.1} parent=0 // pred_region
    _
  $region73: #{tpu_custom_call.1} parent=0 // pred_fallthru
    _
  // Predicated region
  $region74: #{tpu_custom_call.1} parent=0 // pred_check
    _
  $region75: #{tpu_custom_call.1} parent=0 // pred_check_branch
    %67 = sbr.rel (0) target = $region77
  $region76: #{tpu_custom_call.1} parent=0 // pred_region
    _
  $region77: #{tpu_custom_call.1} parent=0 // pred_fallthru
    _
  // Predicated region
  $region78: #{tpu_custom_call.1} parent=0 // pred_check
    _
  $region79: #{tpu_custom_call.1} parent=0 // pred_check_branch
    %69 = sbr.rel (0) target = $region81
  $region80: #{tpu_custom_call.1} parent=0 // pred_region
    _
  $region81: #{tpu_custom_call.1} parent=0 // pred_fallthru
    _
  // Predicated region
  $region82: #{tpu_custom_call.1} parent=0 // pred_check
    _
  $region83: #{tpu_custom_call.1} parent=0 // pred_check_branch
    %71 = sbr.rel (0) target = $region85
  $region84: #{tpu_custom_call.1} parent=0 // pred_region
    _
  $region85: #{tpu_custom_call.1} parent=0 // pred_fallthru
    _
  // Predicated region
  $region86: #{tpu_custom_call.1} parent=0 // pred_check
    _
  $region87: #{tpu_custom_call.1} parent=0 // pred_check_branch
    %73 = sbr.rel (0) target = $region89
  $region88: #{tpu_custom_call.1} parent=0 // pred_region
    _
  $region89: #{tpu_custom_call.1} parent=0 // pred_fallthru
    _
  // Predicated region
  $region90: #{tpu_custom_call.1} parent=0 // pred_check
    _
  $region91: #{tpu_custom_call.1} parent=0 // pred_check_branch
    %75 = sbr.rel (0) target = $region93
  $region92: #{tpu_custom_call.1} parent=0 // pred_region
    _
  $region93: #{tpu_custom_call.1} parent=0 // pred_fallthru
    _
  %v77 = vld [vmem:[%s1] sm:$0xff]
  %v78 = vld [vmem:[%s1 + $0x8] sm:$0xff]
  %v79 = vld [vmem:[%s3] sm:$0xff]
  %v80 = vld [vmem:[%s3 + $0x8] sm:$0xff]
  %vm81 = vcmask 7168
  %v82 = vsel %vm81, %v79, 0.0
  %v83 = vsel %vm81, %v80, 0.0
  %v84 = vadd.f32 %v82, %v83
  %v85 = vrot.slane %v84, 4
  %v86 = vadd.f32 %v84, %v85
  %v87 = vrot.slane %v86, 2
  %v88 = vadd.f32 %v86, %v87
  %v89 = vrot.slane %v88, 1
  %v90 = vadd.f32 %v88, %v89
  %v91 = vrcp.pop %v90
  %v92 = vmul.f32 1.0, %v91
  %v93 = vld [vmem:[%s2] sm:$0x3]
  %v94 = vld [vmem:[%s2 + $0x2] sm:$0x3]
  %v95 = vunpack.c.0.s8 %v93
  %v96 = vunpack.c.0.s8 %v94
  %v97 = vcvt.s32.f32 %v95
  %v98 = vcvt.s32.f32 %v96
  %vm99 = vcmp.gt.f32.partialorder %v97, 0.0
  %vm100 = vcmp.gt.f32.partialorder %v98, 0.0
  %v101 = vsel %vm99, 0.0, -1e+30
  %v102 = vsel %vm100, 0.0, -1e+30
  %v103 = vpack.c.bf16 %v78, %v77
  %v104 = vld [vmem:[%s22] sm:$0xff]
  %v105 = vpack.c.bf16 %v104, %v104
  %v106 = vld [vmem:[%s23] sm:$0x1]
  %v108 = vlaneseq
  %v109 = vshrl.u32 %v108, 7
  %v110 = vsub.s32 0, %v109
  %v111 = vrot.slane %v106, %v110
  %vm113 = vcmask 64512
  %v115 = vsel %vm113, %v103, 0
  %vm117 = vcmask 1043456
  %v119 = vsel %vm117, %v105, 0
  %121 = vmatprep.subr.bf16.mxu0 0
  %122 = vmatpush1.bf16.msra.mxu0 %v119
  %123 = vmatprep.subr.bf16.mxu0 0
  %124 = vmatpush1.bf16.msra.mxu0 0
  %125 = vmatprep.subr.bf16.mxu0 0
  %126 = vmatpush1.bf16.msra.mxu0 0
  %127 = vmatprep.subr.bf16.mxu0 0
  %128 = vmatpush1.bf16.msra.mxu0 0
  %129 = vmatprep.subr.bf16.mxu0 0
  %130 = vmatpush1.bf16.msra.mxu0 0
  %131 = vmatprep.subr.bf16.mxu0 0
  %132 = vmatpush1.bf16.msra.mxu0 0
  %133 = vmatprep.subr.bf16.mxu0 0
  %134 = vmatpush1.bf16.msra.mxu0 0
  %135 = vmatprep.subr.bf16.mxu0 0
  %136 = vmatpush1.bf16.msra.mxu0 0
  %137 = vmatprep.subr.bf16.mxu0 0
  %138 = vmatpush1.bf16.msra.mxu0 0
  %139 = vmatprep.subr.bf16.mxu0 0
  %140 = vmatpush1.bf16.msra.mxu0 0
  %141 = vmatprep.subr.bf16.mxu0 0
  %142 = vmatpush1.bf16.msra.mxu0 0
  %143 = vmatprep.subr.bf16.mxu0 0
  %144 = vmatpush1.bf16.msra.mxu0 0
  %145 = vmatprep.subr.bf16.mxu0 0
  %146 = vmatpush1.bf16.msra.mxu0 0
  %147 = vmatprep.subr.bf16.mxu0 0
  %148 = vmatpush1.bf16.msra.mxu0 0
  %149 = vmatprep.subr.bf16.mxu0 0
  %150 = vmatpush1.bf16.msra.mxu0 0
  %151 = vmatprep.subr.bf16.mxu0 0
  %152 = vmatpush1.bf16.msra.mxu0 0
  %153 = vmatprep.mubr.bf16.mxu0 0
  %154 = vmatmul.mubr.bf16.gmra.mrb[0].mxu0 %v115
  %v155 = vpop.f32.mrb[0].mxu0
  %v156 = vadd.f32 %v111, %v155
  %v157 = vpop.f32.mrb[0].mxu0
  %v158 = vpop.f32.mrb[0].mxu0
  %v159 = vadd.f32 %v111, %v158
  %v160 = vpop.f32.mrb[0].mxu0
  %161 = vdwg.mxu0
  %v162 = vld [vmem:[%s4] sm:$0xff]
  %v163 = vld [vmem:[%s5] sm:$0xf]
  %v164 = vld [vmem:[%s6] sm:$0xf]
  %v165 = vld [vmem:[%s7] sm:$0x1]
  %v166 = vpack.c.bf16 %v162, %v162
  %v168 = vsel %vm117, %v166, 0
  %170 = vmatprep.subr.bf16.mxu0 0
  %171 = vmatpush1.bf16.msra.mxu0 %v168
  %172 = vmatprep.subr.bf16.mxu0 0
  %173 = vmatpush1.bf16.msra.mxu0 0
  %174 = vmatprep.subr.bf16.mxu0 0
  %175 = vmatpush1.bf16.msra.mxu0 0
  %176 = vmatprep.subr.bf16.mxu0 0
  %177 = vmatpush1.bf16.msra.mxu0 0
  %178 = vmatprep.subr.bf16.mxu0 0
  %179 = vmatpush1.bf16.msra.mxu0 0
  %180 = vmatprep.subr.bf16.mxu0 0
  %181 = vmatpush1.bf16.msra.mxu0 0
  %182 = vmatprep.subr.bf16.mxu0 0
  %183 = vmatpush1.bf16.msra.mxu0 0
  %184 = vmatprep.subr.bf16.mxu0 0
  %185 = vmatpush1.bf16.msra.mxu0 0
  %186 = vmatprep.subr.bf16.mxu0 0
  %187 = vmatpush1.bf16.msra.mxu0 0
  %188 = vmatprep.subr.bf16.mxu0 0
  %189 = vmatpush1.bf16.msra.mxu0 0
  %190 = vmatprep.subr.bf16.mxu0 0
  %191 = vmatpush1.bf16.msra.mxu0 0
  %192 = vmatprep.subr.bf16.mxu0 0
  %193 = vmatpush1.bf16.msra.mxu0 0
  %194 = vmatprep.subr.bf16.mxu0 0
  %195 = vmatpush1.bf16.msra.mxu0 0
  %196 = vmatprep.subr.bf16.mxu0 0
  %197 = vmatpush1.bf16.msra.mxu0 0
  %198 = vmatprep.subr.bf16.mxu0 0
  %199 = vmatpush1.bf16.msra.mxu0 0
  %200 = vmatprep.subr.bf16.mxu0 0
  %201 = vmatpush1.bf16.msra.mxu0 0
  %202 = vmatprep.mubr.bf16.mxu0 0
  %203 = vmatmul.mubr.bf16.gmra.mrb[0].mxu0 %v115
  %v204 = vpop.f32.mrb[0].mxu0
  %v205 = vadd.f32 0.0, %v204
  %v206 = vpop.f32.mrb[0].mxu0
  %v207 = vpop.f32.mrb[0].mxu0
  %v208 = vadd.f32 0.0, %v207
  %v209 = vpop.f32.mrb[0].mxu0
  %210 = vdwg.mxu0
  %v211 = vlaneseq
  %v212 = vshrl.u32 %v211, 7
  %v213 = vsub.s32 0, %v212
  %v214 = vrot.slane %v163, %v213
  %v215 = vmul.f32 %v205, %v214
  %v216 = vmul.f32 %v208, %v214
  %v217 = vsel %vm113, %v215, 0.0
  %218 = vadd.xlane.f32.xlu0 %v217
  %v219 = vpop.xlane.xlu0 %218
  %v220 = vsel %vm113, %v216, 0.0
  %221 = vadd.xlane.f32.xlu0 %v220
  %v222 = vpop.xlane.xlu0 %221
  %v223 = vlaneseq
  %v224 = vshrl.u32 %v223, 7
  %v225 = vsub.s32 0, %v224
  %v226 = vrot.slane %v164, %v225
  %v227 = vmul.f32 %v205, %v226
  %v228 = vmul.f32 %v208, %v226
  %v229 = vsel %vm113, %v227, 0.0
  %230 = vadd.xlane.f32.xlu0 %v229
  %v231 = vpop.xlane.xlu0 %230
  %v232 = vsel %vm113, %v228, 0.0
  %233 = vadd.xlane.f32.xlu0 %v232
  %v234 = vpop.xlane.xlu0 %233
  %235 = vxpose.xlu0.b32.start [1/16] %v219, 128
  %236 = vxpose.xlu0.b32.cont [2/16] %v222, 128
  %237 = vxpose.xlu0.b32.cont [3/16] 0.0, 128
  %238 = vxpose.xlu0.b32.cont [4/16] 0.0, 128
  %239 = vxpose.xlu0.b32.cont [5/16] 0.0, 128
  %240 = vxpose.xlu0.b32.cont [6/16] 0.0, 128
  %241 = vxpose.xlu0.b32.cont [7/16] 0.0, 128
  %242 = vxpose.xlu0.b32.cont [8/16] 0.0, 128
  %243 = vxpose.xlu0.b32.cont [9/16] 0.0, 128
  %244 = vxpose.xlu0.b32.cont [10/16] 0.0, 128
  %245 = vxpose.xlu0.b32.cont [11/16] 0.0, 128
  %246 = vxpose.xlu0.b32.cont [12/16] 0.0, 128
  %247 = vxpose.xlu0.b32.cont [13/16] 0.0, 128
  %248 = vxpose.xlu0.b32.cont [14/16] 0.0, 128
  %249 = vxpose.xlu0.b32.cont [15/16] 0.0, 128
  %250 = vxpose.xlu0.b32.end [16/16] 0.0, 128
  %v251 = vpop.trf.xlu0
  %v252 = vpop.trf.xlu0
  %v253 = vpop.trf.xlu0
  %v254 = vpop.trf.xlu0
  %v255 = vpop.trf.xlu0
  %v256 = vpop.trf.xlu0
  %v257 = vpop.trf.xlu0
  %v258 = vpop.trf.xlu0
  %v259 = vpop.trf.xlu0
  %v260 = vpop.trf.xlu0
  %v261 = vpop.trf.xlu0
  %v262 = vpop.trf.xlu0
  %v263 = vpop.trf.xlu0
  %v264 = vpop.trf.xlu0
  %v265 = vpop.trf.xlu0
  %v266 = vpop.trf.xlu0
  %v267 = vlaneseq
  %v268 = vshrl.u32 %v267, 7
  %v269 = vsub.s32 0, %v268
  %v270 = vrot.slane %v251, %v269
  %v271 = vadd.f32 %v231, %v270
  %v272 = vadd.f32 %v234, %v270
  %vm273 = vcmp.gt.f32.partialorder %v271, 0.0
  %vm274 = vcmp.gt.f32.partialorder %v272, 0.0
  %v275 = vmul.f32 %v271, 0.2
  %v276 = vmul.f32 %v272, 0.2
  %v277 = vsel %vm273, %v271, %v275
  %v278 = vsel %vm274, %v272, %v276
  %v279 = vadd.f32 %v277, %v101
  %v280 = vadd.f32 %v278, %v102
  %vm281 = vcmask 130048
  %v282 = vsel %vm281, %v279, -inf
  %283 = vmax.xlane.f32.xlu0 %v282
  %v284 = vpop.xlane.xlu0 %283
  %v285 = vsel %vm281, %v280, -inf
  %286 = vmax.xlane.f32.xlu0 %v285
  %v287 = vpop.xlane.xlu0 %286
  %v288 = vsub.f32 %v279, %v284
  %v289 = vsub.f32 %v280, %v287
  %v290 = vmul.f32 %v288, 1.442695
  %v291 = vpow.pop %v290
  %v292 = vmul.f32 %v289, 1.442695
  %v293 = vpow.pop %v292
  %v294 = vsel %vm281, %v291, 0.0
  %295 = vadd.xlane.f32.xlu0 %v294
  %v296 = vpop.xlane.xlu0 %295
  %v297 = vsel %vm281, %v293, 0.0
  %298 = vadd.xlane.f32.xlu0 %v297
  %v299 = vpop.xlane.xlu0 %298
  %v300 = vrcp.pop %v296
  %v301 = vrcp.pop %v299
  %v302 = vmul.f32 %v291, %v300
  %v303 = vmul.f32 %v293, %v301
  %v304 = vpack.c.bf16 %v303, %v302
  %v305 = vpack.c.bf16 %v208, %v205
  %v307 = vsel %vm281, %v304, 0
  %309 = vmatprep.subr.bf16.mxu0 0
  %310 = vmatpush1.bf16.msra.mxu0 %v305
  %311 = vmatprep.subr.bf16.mxu0 0
  %312 = vmatpush1.bf16.msra.mxu0 0
  %313 = vmatprep.subr.bf16.mxu0 0
  %314 = vmatpush1.bf16.msra.mxu0 0
  %315 = vmatprep.subr.bf16.mxu0 0
  %316 = vmatpush1.bf16.msra.mxu0 0
  %317 = vmatprep.subr.bf16.mxu0 0
  %318 = vmatpush1.bf16.msra.mxu0 0
  %319 = vmatprep.subr.bf16.mxu0 0
  %320 = vmatpush1.bf16.msra.mxu0 0
  %321 = vmatprep.subr.bf16.mxu0 0
  %322 = vmatpush1.bf16.msra.mxu0 0
  %323 = vmatprep.subr.bf16.mxu0 0
  %324 = vmatpush1.bf16.msra.mxu0 0
  %325 = vmatprep.subr.bf16.mxu0 0
  %326 = vmatpush1.bf16.msra.mxu0 0
  %327 = vmatprep.subr.bf16.mxu0 0
  %328 = vmatpush1.bf16.msra.mxu0 0
  %329 = vmatprep.subr.bf16.mxu0 0
  %330 = vmatpush1.bf16.msra.mxu0 0
  %331 = vmatprep.subr.bf16.mxu0 0
  %332 = vmatpush1.bf16.msra.mxu0 0
  %333 = vmatprep.subr.bf16.mxu0 0
  %334 = vmatpush1.bf16.msra.mxu0 0
  %335 = vmatprep.subr.bf16.mxu0 0
  %336 = vmatpush1.bf16.msra.mxu0 0
  %337 = vmatprep.subr.bf16.mxu0 0
  %338 = vmatpush1.bf16.msra.mxu0 0
  %339 = vmatprep.subr.bf16.mxu0 0
  %340 = vmatpush1.bf16.msra.mxu0 0
  %341 = vmatprep.mubr.bf16.mxu0 0
  %342 = vmatmul.mubr.bf16.gmra.mrb[0].mxu0 %v307
  %v343 = vpop.f32.mrb[0].mxu0
  %v344 = vadd.f32 0.0, %v343
  %v345 = vpop.f32.mrb[0].mxu0
  %v346 = vpop.f32.mrb[0].mxu0
  %v347 = vadd.f32 0.0, %v346
  %v348 = vpop.f32.mrb[0].mxu0
  %349 = vdwg.mxu0
  %350 = vst.msk [vmem:[#allocation2] sm:$0xff] %vm113, %v344
  %351 = vst.msk [vmem:[#allocation2 + $0x8] sm:$0xff] %vm113, %v347
  %v352 = vlaneseq
  %v353 = vshrl.u32 %v352, 7
  %v354 = vsub.s32 1, %v353
  %v355 = vrot.slane %v163, %v354
  %357 = vrot.lane.b32.xlu0 %v355, 8
  %v358 = vpop.permute.xlu0 %357
  %v360 = vmul.f32 %v205, %v358
  %v361 = vmul.f32 %v208, %v358
  %364 = vrot.lane.b32.xlu0 %v360, 120
  %v365 = vpop.permute.xlu0 %364
  %366 = vrot.lane.b32.xlu0 %v361, 120
  %v367 = vpop.permute.xlu0 %366
  %v370 = vsel %vm113, %v365, 0.0
  %371 = vadd.xlane.f32.xlu0 %v370
  %v372 = vpop.xlane.xlu0 %371
  %v373 = vsel %vm113, %v367, 0.0
  %374 = vadd.xlane.f32.xlu0 %v373
  %v375 = vpop.xlane.xlu0 %374
  %v376 = vlaneseq
  %v377 = vshrl.u32 %v376, 7
  %v378 = vsub.s32 1, %v377
  %v379 = vrot.slane %v164, %v378
  %381 = vrot.lane.b32.xlu0 %v379, 8
  %v382 = vpop.permute.xlu0 %381
  %v384 = vmul.f32 %v205, %v382
  %v385 = vmul.f32 %v208, %v382
  %388 = vrot.lane.b32.xlu0 %v384, 120
  %v389 = vpop.permute.xlu0 %388
  %390 = vrot.lane.b32.xlu0 %v385, 120
  %v391 = vpop.permute.xlu0 %390
  %v394 = vsel %vm113, %v389, 0.0
  %395 = vadd.xlane.f32.xlu0 %v394
  %v396 = vpop.xlane.xlu0 %395
  %v397 = vsel %vm113, %v391, 0.0
  %398 = vadd.xlane.f32.xlu0 %v397
  %v399 = vpop.xlane.xlu0 %398
  %400 = vxpose.xlu0.b32.start [1/16] %v372, 128
  %401 = vxpose.xlu0.b32.cont [2/16] %v375, 128
  %402 = vxpose.xlu0.b32.cont [3/16] 0.0, 128
  %403 = vxpose.xlu0.b32.cont [4/16] 0.0, 128
  %404 = vxpose.xlu0.b32.cont [5/16] 0.0, 128
  %405 = vxpose.xlu0.b32.cont [6/16] 0.0, 128
  %406 = vxpose.xlu0.b32.cont [7/16] 0.0, 128
  %407 = vxpose.xlu0.b32.cont [8/16] 0.0, 128
  %408 = vxpose.xlu0.b32.cont [9/16] 0.0, 128
  %409 = vxpose.xlu0.b32.cont [10/16] 0.0, 128
  %410 = vxpose.xlu0.b32.cont [11/16] 0.0, 128
  %411 = vxpose.xlu0.b32.cont [12/16] 0.0, 128
  %412 = vxpose.xlu0.b32.cont [13/16] 0.0, 128
  %413 = vxpose.xlu0.b32.cont [14/16] 0.0, 128
  %414 = vxpose.xlu0.b32.cont [15/16] 0.0, 128
  %415 = vxpose.xlu0.b32.end [16/16] 0.0, 128
  %v416 = vpop.trf.xlu0
  %v417 = vpop.trf.xlu0
  %v418 = vpop.trf.xlu0
  %v419 = vpop.trf.xlu0
  %v420 = vpop.trf.xlu0
  %v421 = vpop.trf.xlu0
  %v422 = vpop.trf.xlu0
  %v423 = vpop.trf.xlu0
  %v424 = vpop.trf.xlu0
  %v425 = vpop.trf.xlu0
  %v426 = vpop.trf.xlu0
  %v427 = vpop.trf.xlu0
  %v428 = vpop.trf.xlu0
  %v429 = vpop.trf.xlu0
  %v430 = vpop.trf.xlu0
  %v431 = vpop.trf.xlu0
  %v432 = vlaneseq
  %v433 = vshrl.u32 %v432, 7
  %v434 = vsub.s32 0, %v433
  %v435 = vrot.slane %v416, %v434
  %v436 = vadd.f32 %v396, %v435
  %v437 = vadd.f32 %v399, %v435
  %vm438 = vcmp.gt.f32.partialorder %v436, 0.0
  %vm439 = vcmp.gt.f32.partialorder %v437, 0.0
  %v440 = vmul.f32 %v436, 0.2
  %v441 = vmul.f32 %v437, 0.2
  %v442 = vsel %vm438, %v436, %v440
  %v443 = vsel %vm439, %v437, %v441
  %v444 = vadd.f32 %v442, %v101
  %v445 = vadd.f32 %v443, %v102
  %v446 = vsel %vm281, %v444, -inf
  %447 = vmax.xlane.f32.xlu0 %v446
  %v448 = vpop.xlane.xlu0 %447
  %v449 = vsel %vm281, %v445, -inf
  %450 = vmax.xlane.f32.xlu0 %v449
  %v451 = vpop.xlane.xlu0 %450
  %v452 = vsub.f32 %v444, %v448
  %v453 = vsub.f32 %v445, %v451
  %v454 = vmul.f32 %v452, 1.442695
  %v455 = vpow.pop %v454
  %v456 = vmul.f32 %v453, 1.442695
  %v457 = vpow.pop %v456
  %v458 = vsel %vm281, %v455, 0.0
  %459 = vadd.xlane.f32.xlu0 %v458
  %v460 = vpop.xlane.xlu0 %459
  %v461 = vsel %vm281, %v457, 0.0
  %462 = vadd.xlane.f32.xlu0 %v461
  %v463 = vpop.xlane.xlu0 %462
  %v464 = vrcp.pop %v460
  %v465 = vrcp.pop %v463
  %v466 = vmul.f32 %v455, %v464
  %v467 = vmul.f32 %v457, %v465
  %v468 = vpack.c.bf16 %v467, %v466
  %470 = vrot.lane.b32.xlu0 %v305, 120
  %v471 = vpop.permute.xlu0 %470
  %v474 = vsel %vm281, %v468, 0
  %476 = vmatprep.subr.bf16.mxu0 0
  %477 = vmatpush1.bf16.msra.mxu0 %v471
  %478 = vmatprep.subr.bf16.mxu0 0
  %479 = vmatpush1.bf16.msra.mxu0 0
  %480 = vmatprep.subr.bf16.mxu0 0
  %481 = vmatpush1.bf16.msra.mxu0 0
  %482 = vmatprep.subr.bf16.mxu0 0
  %483 = vmatpush1.bf16.msra.mxu0 0
  %484 = vmatprep.subr.bf16.mxu0 0
  %485 = vmatpush1.bf16.msra.mxu0 0
  %486 = vmatprep.subr.bf16.mxu0 0
  %487 = vmatpush1.bf16.msra.mxu0 0
  %488 = vmatprep.subr.bf16.mxu0 0
  %489 = vmatpush1.bf16.msra.mxu0 0
  %490 = vmatprep.subr.bf16.mxu0 0
  %491 = vmatpush1.bf16.msra.mxu0 0
  %492 = vmatprep.subr.bf16.mxu0 0
  %493 = vmatpush1.bf16.msra.mxu0 0
  %494 = vmatprep.subr.bf16.mxu0 0
  %495 = vmatpush1.bf16.msra.mxu0 0
  %496 = vmatprep.subr.bf16.mxu0 0
  %497 = vmatpush1.bf16.msra.mxu0 0
  %498 = vmatprep.subr.bf16.mxu0 0
  %499 = vmatpush1.bf16.msra.mxu0 0
  %500 = vmatprep.subr.bf16.mxu0 0
  %501 = vmatpush1.bf16.msra.mxu0 0
  %502 = vmatprep.subr.bf16.mxu0 0
  %503 = vmatpush1.bf16.msra.mxu0 0
  %504 = vmatprep.subr.bf16.mxu0 0
  %505 = vmatpush1.bf16.msra.mxu0 0
  %506 = vmatprep.subr.bf16.mxu0 0
  %507 = vmatpush1.bf16.msra.mxu0 0
  %508 = vmatprep.mubr.bf16.mxu0 0
  %509 = vmatmul.mubr.bf16.gmra.mrb[0].mxu0 %v474
  %v510 = vpop.f32.mrb[0].mxu0
  %v511 = vadd.f32 0.0, %v510
  %v512 = vpop.f32.mrb[0].mxu0
  %v513 = vpop.f32.mrb[0].mxu0
  %v514 = vadd.f32 0.0, %v513
  %v515 = vpop.f32.mrb[0].mxu0
  %516 = vdwg.mxu0
  %519 = vrot.lane.b32.xlu0 %v511, 8
  %v520 = vpop.permute.xlu0 %519
  %521 = vrot.lane.b32.xlu0 %v514, 8
  %v522 = vpop.permute.xlu0 %521
  %vm525 = vcmask 130112
  %526 = vst.msk [vmem:[#allocation2] sm:$0xff] %vm525, %v520
  %527 = vst.msk [vmem:[#allocation2 + $0x8] sm:$0xff] %vm525, %v522
  %v528 = vlaneseq
  %v529 = vshrl.u32 %v528, 7
  %v530 = vsub.s32 2, %v529
  %v531 = vrot.slane %v163, %v530
  %533 = vrot.lane.b32.xlu0 %v531, 16
  %v534 = vpop.permute.xlu0 %533
  %v536 = vmul.f32 %v205, %v534
  %v537 = vmul.f32 %v208, %v534
  %540 = vrot.lane.b32.xlu0 %v536, 112
  %v541 = vpop.permute.xlu0 %540
  %542 = vrot.lane.b32.xlu0 %v537, 112
  %v543 = vpop.permute.xlu0 %542
  %v546 = vsel %vm113, %v541, 0.0
  %547 = vadd.xlane.f32.xlu0 %v546
  %v548 = vpop.xlane.xlu0 %547
  %v549 = vsel %vm113, %v543, 0.0
  %550 = vadd.xlane.f32.xlu0 %v549
  %v551 = vpop.xlane.xlu0 %550
  %v552 = vlaneseq
  %v553 = vshrl.u32 %v552, 7
  %v554 = vsub.s32 2, %v553
  %v555 = vrot.slane %v164, %v554
  %557 = vrot.lane.b32.xlu0 %v555, 16
  %v558 = vpop.permute.xlu0 %557
  %v560 = vmul.f32 %v205, %v558
  %v561 = vmul.f32 %v208, %v558
  %564 = vrot.lane.b32.xlu0 %v560, 112
  %v565 = vpop.permute.xlu0 %564
  %566 = vrot.lane.b32.xlu0 %v561, 112
  %v567 = vpop.permute.xlu0 %566
  %v570 = vsel %vm113, %v565, 0.0
  %571 = vadd.xlane.f32.xlu0 %v570
  %v572 = vpop.xlane.xlu0 %571
  %v573 = vsel %vm113, %v567, 0.0
  %574 = vadd.xlane.f32.xlu0 %v573
  %v575 = vpop.xlane.xlu0 %574
  %576 = vxpose.xlu0.b32.start [1/16] %v548, 128
  %577 = vxpose.xlu0.b32.cont [2/16] %v551, 128
  %578 = vxpose.xlu0.b32.cont [3/16] 0.0, 128
  %579 = vxpose.xlu0.b32.cont [4/16] 0.0, 128
  %580 = vxpose.xlu0.b32.cont [5/16] 0.0, 128
  %581 = vxpose.xlu0.b32.cont [6/16] 0.0, 128
  %582 = vxpose.xlu0.b32.cont [7/16] 0.0, 128
  %583 = vxpose.xlu0.b32.cont [8/16] 0.0, 128
  %584 = vxpose.xlu0.b32.cont [9/16] 0.0, 128
  %585 = vxpose.xlu0.b32.cont [10/16] 0.0, 128
  %586 = vxpose.xlu0.b32.cont [11/16] 0.0, 128
  %587 = vxpose.xlu0.b32.cont [12/16] 0.0, 128
  %588 = vxpose.xlu0.b32.cont [13/16] 0.0, 128
  %589 = vxpose.xlu0.b32.cont [14/16] 0.0, 128
  %590 = vxpose.xlu0.b32.cont [15/16] 0.0, 128
  %591 = vxpose.xlu0.b32.end [16/16] 0.0, 128
  %v592 = vpop.trf.xlu0
  %v593 = vpop.trf.xlu0
  %v594 = vpop.trf.xlu0
  %v595 = vpop.trf.xlu0
  %v596 = vpop.trf.xlu0
  %v597 = vpop.trf.xlu0
  %v598 = vpop.trf.xlu0
  %v599 = vpop.trf.xlu0
  %v600 = vpop.trf.xlu0
  %v601 = vpop.trf.xlu0
  %v602 = vpop.trf.xlu0
  %v603 = vpop.trf.xlu0
  %v604 = vpop.trf.xlu0
  %v605 = vpop.trf.xlu0
  %v606 = vpop.trf.xlu0
  %v607 = vpop.trf.xlu0
  %v608 = vlaneseq
  %v609 = vshrl.u32 %v608, 7
  %v610 = vsub.s32 0, %v609
  %v611 = vrot.slane %v592, %v610
  %v612 = vadd.f32 %v572, %v611
  %v613 = vadd.f32 %v575, %v611
  %vm614 = vcmp.gt.f32.partialorder %v612, 0.0
  %vm615 = vcmp.gt.f32.partialorder %v613, 0.0
  %v616 = vmul.f32 %v612, 0.2
  %v617 = vmul.f32 %v613, 0.2
  %v618 = vsel %vm614, %v612, %v616
  %v619 = vsel %vm615, %v613, %v617
  %v620 = vadd.f32 %v618, %v101
  %v621 = vadd.f32 %v619, %v102
  %v622 = vsel %vm281, %v620, -inf
  %623 = vmax.xlane.f32.xlu0 %v622
  %v624 = vpop.xlane.xlu0 %623
  %v625 = vsel %vm281, %v621, -inf
  %626 = vmax.xlane.f32.xlu0 %v625
  %v627 = vpop.xlane.xlu0 %626
  %v628 = vsub.f32 %v620, %v624
  %v629 = vsub.f32 %v621, %v627
  %v630 = vmul.f32 %v628, 1.442695
  %v631 = vpow.pop %v630
  %v632 = vmul.f32 %v629, 1.442695
  %v633 = vpow.pop %v632
  %v634 = vsel %vm281, %v631, 0.0
  %635 = vadd.xlane.f32.xlu0 %v634
  %v636 = vpop.xlane.xlu0 %635
  %v637 = vsel %vm281, %v633, 0.0
  %638 = vadd.xlane.f32.xlu0 %v637
  %v639 = vpop.xlane.xlu0 %638
  %v640 = vrcp.pop %v636
  %v641 = vrcp.pop %v639
  %v642 = vmul.f32 %v631, %v640
  %v643 = vmul.f32 %v633, %v641
  %v644 = vpack.c.bf16 %v643, %v642
  %645 = vrot.lane.b32.xlu0 %v305, 112
  %v646 = vpop.permute.xlu0 %645
  %v649 = vsel %vm281, %v644, 0
  %651 = vmatprep.subr.bf16.mxu0 0
  %652 = vmatpush1.bf16.msra.mxu0 %v646
  %653 = vmatprep.subr.bf16.mxu0 0
  %654 = vmatpush1.bf16.msra.mxu0 0
  %655 = vmatprep.subr.bf16.mxu0 0
  %656 = vmatpush1.bf16.msra.mxu0 0
  %657 = vmatprep.subr.bf16.mxu0 0
  %658 = vmatpush1.bf16.msra.mxu0 0
  %659 = vmatprep.subr.bf16.mxu0 0
  %660 = vmatpush1.bf16.msra.mxu0 0
  %661 = vmatprep.subr.bf16.mxu0 0
  %662 = vmatpush1.bf16.msra.mxu0 0
  %663 = vmatprep.subr.bf16.mxu0 0
  %664 = vmatpush1.bf16.msra.mxu0 0
  %665 = vmatprep.subr.bf16.mxu0 0
  %666 = vmatpush1.bf16.msra.mxu0 0
  %667 = vmatprep.subr.bf16.mxu0 0
  %668 = vmatpush1.bf16.msra.mxu0 0
  %669 = vmatprep.subr.bf16.mxu0 0
  %670 = vmatpush1.bf16.msra.mxu0 0
  %671 = vmatprep.subr.bf16.mxu0 0
  %672 = vmatpush1.bf16.msra.mxu0 0
  %673 = vmatprep.subr.bf16.mxu0 0
  %674 = vmatpush1.bf16.msra.mxu0 0
  %675 = vmatprep.subr.bf16.mxu0 0
  %676 = vmatpush1.bf16.msra.mxu0 0
  %677 = vmatprep.subr.bf16.mxu0 0
  %678 = vmatpush1.bf16.msra.mxu0 0
  %679 = vmatprep.subr.bf16.mxu0 0
  %680 = vmatpush1.bf16.msra.mxu0 0
  %681 = vmatprep.subr.bf16.mxu0 0
  %682 = vmatpush1.bf16.msra.mxu0 0
  %683 = vmatprep.mubr.bf16.mxu0 0
  %684 = vmatmul.mubr.bf16.gmra.mrb[0].mxu0 %v649
  %v685 = vpop.f32.mrb[0].mxu0
  %v686 = vadd.f32 0.0, %v685
  %v687 = vpop.f32.mrb[0].mxu0
  %v688 = vpop.f32.mrb[0].mxu0
  %v689 = vadd.f32 0.0, %v688
  %v690 = vpop.f32.mrb[0].mxu0
  %691 = vdwg.mxu0
  %694 = vrot.lane.b32.xlu0 %v686, 16
  %v695 = vpop.permute.xlu0 %694
  %696 = vrot.lane.b32.xlu0 %v689, 16
  %v697 = vpop.permute.xlu0 %696
  %vm700 = vcmask 195712
  %701 = vst.msk [vmem:[#allocation2] sm:$0xff] %vm700, %v695
  %702 = vst.msk [vmem:[#allocation2 + $0x8] sm:$0xff] %vm700, %v697
  %v703 = vlaneseq
  %v704 = vshrl.u32 %v703, 7
  %v705 = vsub.s32 3, %v704
  %v706 = vrot.slane %v163, %v705
  %708 = vrot.lane.b32.xlu0 %v706, 24
  %v709 = vpop.permute.xlu0 %708
  %v711 = vmul.f32 %v205, %v709
  %v712 = vmul.f32 %v208, %v709
  %715 = vrot.lane.b32.xlu0 %v711, 104
  %v716 = vpop.permute.xlu0 %715
  %717 = vrot.lane.b32.xlu0 %v712, 104
  %v718 = vpop.permute.xlu0 %717
  %v721 = vsel %vm113, %v716, 0.0
  %722 = vadd.xlane.f32.xlu0 %v721
  %v723 = vpop.xlane.xlu0 %722
  %v724 = vsel %vm113, %v718, 0.0
  %725 = vadd.xlane.f32.xlu0 %v724
  %v726 = vpop.xlane.xlu0 %725
  %v727 = vlaneseq
  %v728 = vshrl.u32 %v727, 7
  %v729 = vsub.s32 3, %v728
  %v730 = vrot.slane %v164, %v729
  %732 = vrot.lane.b32.xlu0 %v730, 24
  %v733 = vpop.permute.xlu0 %732
  %v735 = vmul.f32 %v205, %v733
  %v736 = vmul.f32 %v208, %v733
  %739 = vrot.lane.b32.xlu0 %v735, 104
  %v740 = vpop.permute.xlu0 %739
  %741 = vrot.lane.b32.xlu0 %v736, 104
  %v742 = vpop.permute.xlu0 %741
  %v745 = vsel %vm113, %v740, 0.0
  %746 = vadd.xlane.f32.xlu0 %v745
  %v747 = vpop.xlane.xlu0 %746
  %v748 = vsel %vm113, %v742, 0.0
  %749 = vadd.xlane.f32.xlu0 %v748
  %v750 = vpop.xlane.xlu0 %749
  %751 = vxpose.xlu0.b32.start [1/16] %v723, 128
  %752 = vxpose.xlu0.b32.cont [2/16] %v726, 128
  %753 = vxpose.xlu0.b32.cont [3/16] 0.0, 128
  %754 = vxpose.xlu0.b32.cont [4/16] 0.0, 128
  %755 = vxpose.xlu0.b32.cont [5/16] 0.0, 128
  %756 = vxpose.xlu0.b32.cont [6/16] 0.0, 128
  %757 = vxpose.xlu0.b32.cont [7/16] 0.0, 128
  %758 = vxpose.xlu0.b32.cont [8/16] 0.0, 128
  %759 = vxpose.xlu0.b32.cont [9/16] 0.0, 128
  %760 = vxpose.xlu0.b32.cont [10/16] 0.0, 128
  %761 = vxpose.xlu0.b32.cont [11/16] 0.0, 128
  %762 = vxpose.xlu0.b32.cont [12/16] 0.0, 128
  %763 = vxpose.xlu0.b32.cont [13/16] 0.0, 128
  %764 = vxpose.xlu0.b32.cont [14/16] 0.0, 128
  %765 = vxpose.xlu0.b32.cont [15/16] 0.0, 128
  %766 = vxpose.xlu0.b32.end [16/16] 0.0, 128
  %v767 = vpop.trf.xlu0
  %v768 = vpop.trf.xlu0
  %v769 = vpop.trf.xlu0
  %v770 = vpop.trf.xlu0
  %v771 = vpop.trf.xlu0
  %v772 = vpop.trf.xlu0
  %v773 = vpop.trf.xlu0
  %v774 = vpop.trf.xlu0
  %v775 = vpop.trf.xlu0
  %v776 = vpop.trf.xlu0
  %v777 = vpop.trf.xlu0
  %v778 = vpop.trf.xlu0
  %v779 = vpop.trf.xlu0
  %v780 = vpop.trf.xlu0
  %v781 = vpop.trf.xlu0
  %v782 = vpop.trf.xlu0
  %v783 = vlaneseq
  %v784 = vshrl.u32 %v783, 7
  %v785 = vsub.s32 0, %v784
  %v786 = vrot.slane %v767, %v785
  %v787 = vadd.f32 %v747, %v786
  %v788 = vadd.f32 %v750, %v786
  %vm789 = vcmp.gt.f32.partialorder %v787, 0.0
  %vm790 = vcmp.gt.f32.partialorder %v788, 0.0
  %v791 = vmul.f32 %v787, 0.2
  %v792 = vmul.f32 %v788, 0.2
  %v793 = vsel %vm789, %v787, %v791
  %v794 = vsel %vm790, %v788, %v792
  %v795 = vadd.f32 %v793, %v101
  %v796 = vadd.f32 %v794, %v102
  %v797 = vsel %vm281, %v795, -inf
  %798 = vmax.xlane.f32.xlu0 %v797
  %v799 = vpop.xlane.xlu0 %798
  %v800 = vsel %vm281, %v796, -inf
  %801 = vmax.xlane.f32.xlu0 %v800
  %v802 = vpop.xlane.xlu0 %801
  %v803 = vsub.f32 %v795, %v799
  %v804 = vsub.f32 %v796, %v802
  %v805 = vmul.f32 %v803, 1.442695
  %v806 = vpow.pop %v805
  %v807 = vmul.f32 %v804, 1.442695
  %v808 = vpow.pop %v807
  %v809 = vsel %vm281, %v806, 0.0
  %810 = vadd.xlane.f32.xlu0 %v809
  %v811 = vpop.xlane.xlu0 %810
  %v812 = vsel %vm281, %v808, 0.0
  %813 = vadd.xlane.f32.xlu0 %v812
  %v814 = vpop.xlane.xlu0 %813
  %v815 = vrcp.pop %v811
  %v816 = vrcp.pop %v814
  %v817 = vmul.f32 %v806, %v815
  %v818 = vmul.f32 %v808, %v816
  %v819 = vpack.c.bf16 %v818, %v817
  %820 = vrot.lane.b32.xlu0 %v305, 104
  %v821 = vpop.permute.xlu0 %820
  %v824 = vsel %vm281, %v819, 0
  %826 = vmatprep.subr.bf16.mxu0 0
  %827 = vmatpush1.bf16.msra.mxu0 %v821
  %828 = vmatprep.subr.bf16.mxu0 0
  %829 = vmatpush1.bf16.msra.mxu0 0
  %830 = vmatprep.subr.bf16.mxu0 0
  %831 = vmatpush1.bf16.msra.mxu0 0
  %832 = vmatprep.subr.bf16.mxu0 0
  %833 = vmatpush1.bf16.msra.mxu0 0
  %834 = vmatprep.subr.bf16.mxu0 0
  %835 = vmatpush1.bf16.msra.mxu0 0
  %836 = vmatprep.subr.bf16.mxu0 0
  %837 = vmatpush1.bf16.msra.mxu0 0
  %838 = vmatprep.subr.bf16.mxu0 0
  %839 = vmatpush1.bf16.msra.mxu0 0
  %840 = vmatprep.subr.bf16.mxu0 0
  %841 = vmatpush1.bf16.msra.mxu0 0
  %842 = vmatprep.subr.bf16.mxu0 0
  %843 = vmatpush1.bf16.msra.mxu0 0
  %844 = vmatprep.subr.bf16.mxu0 0
  %845 = vmatpush1.bf16.msra.mxu0 0
  %846 = vmatprep.subr.bf16.mxu0 0
  %847 = vmatpush1.bf16.msra.mxu0 0
  %848 = vmatprep.subr.bf16.mxu0 0
  %849 = vmatpush1.bf16.msra.mxu0 0
  %850 = vmatprep.subr.bf16.mxu0 0
  %851 = vmatpush1.bf16.msra.mxu0 0
  %852 = vmatprep.subr.bf16.mxu0 0
  %853 = vmatpush1.bf16.msra.mxu0 0
  %854 = vmatprep.subr.bf16.mxu0 0
  %855 = vmatpush1.bf16.msra.mxu0 0
  %856 = vmatprep.subr.bf16.mxu0 0
  %857 = vmatpush1.bf16.msra.mxu0 0
  %858 = vmatprep.mubr.bf16.mxu0 0
  %859 = vmatmul.mubr.bf16.gmra.mrb[0].mxu0 %v824
  %v860 = vpop.f32.mrb[0].mxu0
  %v861 = vadd.f32 0.0, %v860
  %v862 = vpop.f32.mrb[0].mxu0
  %v863 = vpop.f32.mrb[0].mxu0
  %v864 = vadd.f32 0.0, %v863
  %v865 = vpop.f32.mrb[0].mxu0
  %866 = vdwg.mxu0
  %869 = vrot.lane.b32.xlu0 %v861, 24
  %v870 = vpop.permute.xlu0 %869
  %871 = vrot.lane.b32.xlu0 %v864, 24
  %v872 = vpop.permute.xlu0 %871
  %vm875 = vcmask 261312
  %876 = vst.msk [vmem:[#allocation2] sm:$0xff] %vm875, %v870
  %877 = vst.msk [vmem:[#allocation2 + $0x8] sm:$0xff] %vm875, %v872
  %v878 = vld [vmem:[#allocation2] sm:$0xff]
  %v879 = vld [vmem:[#allocation2 + $0x8] sm:$0xff]
  %v881 = vlaneseq
  %v882 = vshrl.u32 %v881, 7
  %v883 = vsub.s32 0, %v882
  %v884 = vrot.slane %v165, %v883
  %v886 = vadd.f32 %v878, %v884
  %v887 = vadd.f32 %v879, %v884
  %v888 = vld [vmem:[%s8] sm:$0x1]
  %v889 = vld [vmem:[%s9] sm:$0x1]
  %v890 = vld [vmem:[%s10] sm:$0x1]
  %892 = vset.pattern.permute.xlu0 0
  %893 = vperm.xlu0 %892, %v79
  %v894 = vpop.permute.xlu0 %893
  %897 = vset.pattern.permute.xlu0 0
  %898 = vperm.xlu0 %897, %v80
  %v899 = vpop.permute.xlu0 %898
  %v901 = vmul.f32 %v886, %v894
  %v902 = vmul.f32 %v887, %v899
  %vm903 = vcmask 261120
  %v904 = vsel %vm903, %v901, 0.0
  %v905 = vsel %vm903, %v902, 0.0
  %v906 = vadd.f32 %v904, %v905
  %v907 = vrot.slane %v906, 4
  %v908 = vadd.f32 %v906, %v907
  %v909 = vrot.slane %v908, 2
  %v910 = vadd.f32 %v908, %v909
  %v911 = vrot.slane %v910, 1
  %v912 = vadd.f32 %v910, %v911
  %914 = vset.pattern.permute.xlu0 0
  %915 = vperm.xlu0 %914, %v92
  %v916 = vpop.permute.xlu0 %915
  %v918 = vmul.f32 %v912, %v916
  %v919 = vmul.f32 %v918, %v890
  %v920 = vlaneseq
  %v921 = vshrl.u32 %v920, 7
  %v922 = vsub.s32 0, %v921
  %v923 = vrot.slane %v919, %v922
  %v924 = vsub.f32 %v886, %v923
  %v925 = vsub.f32 %v887, %v923
  %v926 = vmul.f32 %v924, %v894
  %v927 = vmul.f32 %v925, %v899
  %v928 = vmul.f32 %v926, %v926
  %v929 = vmul.f32 %v927, %v927
  %v930 = vsel %vm903, %v928, 0.0
  %v931 = vsel %vm903, %v929, 0.0
  %v932 = vadd.f32 %v930, %v931
  %v933 = vrot.slane %v932, 4
  %v934 = vadd.f32 %v932, %v933
  %v935 = vrot.slane %v934, 2
  %v936 = vadd.f32 %v934, %v935
  %v937 = vrot.slane %v936, 1
  %v938 = vadd.f32 %v936, %v937
  %v939 = vmul.f32 %v938, %v916
  %v940 = vadd.f32 %v939, 1e-05
  %v941 = vrsqrt.pop %v940
  %v942 = vmul.f32 %v924, %v941
  %v943 = vmul.f32 %v925, %v941
  %v945 = vlaneseq
  %v946 = vshrl.u32 %v945, 7
  %v947 = vsub.s32 0, %v946
  %v948 = vrot.slane %v888, %v947
  %v950 = vmul.f32 %v942, %v948
  %v951 = vmul.f32 %v943, %v948
  %v953 = vlaneseq
  %v954 = vshrl.u32 %v953, 7
  %v955 = vsub.s32 0, %v954
  %v956 = vrot.slane %v889, %v955
  %v958 = vadd.f32 %v950, %v956
  %v959 = vadd.f32 %v951, %v956
  %vm960 = vcmp.gt.f32.partialorder %v958, 0.0
  %vm961 = vcmp.gt.f32.partialorder %v959, 0.0
  %v962 = vmin.f32 %v958, 0.0
  %v963 = vmin.f32 %v959, 0.0
  %v964 = vmul.f32 %v962, 1.442695
  %v965 = vpow.pop %v964
  %v966 = vmul.f32 %v963, 1.442695
  %v967 = vpow.pop %v966
  %v968 = vsub.f32 %v965, 1.0
  %v969 = vsub.f32 %v967, 1.0
  %v970 = vsel %vm960, %v958, %v968
  %v971 = vsel %vm961, %v959, %v969
  %v972 = vld [vmem:[%s11] sm:$0xff]
  %v973 = vld [vmem:[%s11 + $0x8] sm:$0xff]
  %v974 = vld [vmem:[%s11 + $0x10] sm:$0xff]
  %v975 = vld [vmem:[%s11 + $0x18] sm:$0xff]
  %v976 = vld [vmem:[%s12] sm:$0x1]
  %v977 = vld [vmem:[%s13] sm:$0x1]
  %v978 = vld [vmem:[%s14] sm:$0x1]
  %v979 = vpack.c.bf16 %v971, %v970
  %v980 = vpack.c.bf16 %v973, %v972
  %v981 = vpack.c.bf16 %v975, %v974
  %v983 = vsel %vm903, %v979, 0
  %985 = vmatprep.subr.bf16.mxu0 0
  %986 = vmatpush1.bf16.msra.mxu0 %v980
  %987 = vmatprep.subr.bf16.mxu0 0
  %988 = vmatpush1.bf16.msra.mxu0 %v981
  %989 = vmatprep.subr.bf16.mxu0 0
  %990 = vmatpush1.bf16.msra.mxu0 0
  %991 = vmatprep.subr.bf16.mxu0 0
  %992 = vmatpush1.bf16.msra.mxu0 0
  %993 = vmatprep.subr.bf16.mxu0 0
  %994 = vmatpush1.bf16.msra.mxu0 0
  %995 = vmatprep.subr.bf16.mxu0 0
  %996 = vmatpush1.bf16.msra.mxu0 0
  %997 = vmatprep.subr.bf16.mxu0 0
  %998 = vmatpush1.bf16.msra.mxu0 0
  %999 = vmatprep.subr.bf16.mxu0 0
  %1000 = vmatpush1.bf16.msra.mxu0 0
  %1001 = vmatprep.subr.bf16.mxu0 0
  %1002 = vmatpush1.bf16.msra.mxu0 0
  %1003 = vmatprep.subr.bf16.mxu0 0
  %1004 = vmatpush1.bf16.msra.mxu0 0
  %1005 = vmatprep.subr.bf16.mxu0 0
  %1006 = vmatpush1.bf16.msra.mxu0 0
  %1007 = vmatprep.subr.bf16.mxu0 0
  %1008 = vmatpush1.bf16.msra.mxu0 0
  %1009 = vmatprep.subr.bf16.mxu0 0
  %1010 = vmatpush1.bf16.msra.mxu0 0
  %1011 = vmatprep.subr.bf16.mxu0 0
  %1012 = vmatpush1.bf16.msra.mxu0 0
  %1013 = vmatprep.subr.bf16.mxu0 0
  %1014 = vmatpush1.bf16.msra.mxu0 0
  %1015 = vmatprep.subr.bf16.mxu0 0
  %1016 = vmatpush1.bf16.msra.mxu0 0
  %1017 = vmatprep.mubr.bf16.mxu0 0
  %1018 = vmatmul.mubr.bf16.gmra.mrb[0].mxu0 %v983
  %v1019 = vpop.f32.mrb[0].mxu0
  %v1020 = vadd.f32 0.0, %v1019
  %v1021 = vpop.f32.mrb[0].mxu0
  %v1022 = vpop.f32.mrb[0].mxu0
  %v1023 = vadd.f32 0.0, %v1022
  %v1024 = vpop.f32.mrb[0].mxu0
  %1025 = vdwg.mxu0
  %v1027 = vlaneseq
  %v1028 = vshrl.u32 %v1027, 7
  %v1029 = vsub.s32 0, %v1028
  %v1030 = vrot.slane %v976, %v1029
  %v1032 = vmul.f32 %v1020, %v1030
  %v1033 = vmul.f32 %v1023, %v1030
  %v1034 = vsel %vm113, %v1032, 0.0
  %1035 = vadd.xlane.f32.xlu0 %v1034
  %v1036 = vpop.xlane.xlu0 %1035
  %v1037 = vsel %vm113, %v1033, 0.0
  %1038 = vadd.xlane.f32.xlu0 %v1037
  %v1039 = vpop.xlane.xlu0 %1038
  %v1041 = vlaneseq
  %v1042 = vshrl.u32 %v1041, 7
  %v1043 = vsub.s32 0, %v1042
  %v1044 = vrot.slane %v977, %v1043
  %v1046 = vmul.f32 %v1020, %v1044
  %v1047 = vmul.f32 %v1023, %v1044
  %v1048 = vsel %vm113, %v1046, 0.0
  %1049 = vadd.xlane.f32.xlu0 %v1048
  %v1050 = vpop.xlane.xlu0 %1049
  %v1051 = vsel %vm113, %v1047, 0.0
  %1052 = vadd.xlane.f32.xlu0 %v1051
  %v1053 = vpop.xlane.xlu0 %1052
  %1054 = vxpose.xlu0.b32.start [1/16] %v1036, 128
  %1055 = vxpose.xlu0.b32.cont [2/16] %v1039, 128
  %1056 = vxpose.xlu0.b32.cont [3/16] 0.0, 128
  %1057 = vxpose.xlu0.b32.cont [4/16] 0.0, 128
  %1058 = vxpose.xlu0.b32.cont [5/16] 0.0, 128
  %1059 = vxpose.xlu0.b32.cont [6/16] 0.0, 128
  %1060 = vxpose.xlu0.b32.cont [7/16] 0.0, 128
  %1061 = vxpose.xlu0.b32.cont [8/16] 0.0, 128
  %1062 = vxpose.xlu0.b32.cont [9/16] 0.0, 128
  %1063 = vxpose.xlu0.b32.cont [10/16] 0.0, 128
  %1064 = vxpose.xlu0.b32.cont [11/16] 0.0, 128
  %1065 = vxpose.xlu0.b32.cont [12/16] 0.0, 128
  %1066 = vxpose.xlu0.b32.cont [13/16] 0.0, 128
  %1067 = vxpose.xlu0.b32.cont [14/16] 0.0, 128
  %1068 = vxpose.xlu0.b32.cont [15/16] 0.0, 128
  %1069 = vxpose.xlu0.b32.end [16/16] 0.0, 128
  %v1070 = vpop.trf.xlu0
  %v1071 = vpop.trf.xlu0
  %v1072 = vpop.trf.xlu0
  %v1073 = vpop.trf.xlu0
  %v1074 = vpop.trf.xlu0
  %v1075 = vpop.trf.xlu0
  %v1076 = vpop.trf.xlu0
  %v1077 = vpop.trf.xlu0
  %v1078 = vpop.trf.xlu0
  %v1079 = vpop.trf.xlu0
  %v1080 = vpop.trf.xlu0
  %v1081 = vpop.trf.xlu0
  %v1082 = vpop.trf.xlu0
  %v1083 = vpop.trf.xlu0
  %v1084 = vpop.trf.xlu0
  %v1085 = vpop.trf.xlu0
  %v1086 = vlaneseq
  %v1087 = vshrl.u32 %v1086, 7
  %v1088 = vsub.s32 0, %v1087
  %v1089 = vrot.slane %v1070, %v1088
  %v1090 = vadd.f32 %v1050, %v1089
  %v1091 = vadd.f32 %v1053, %v1089
  %vm1092 = vcmp.gt.f32.partialorder %v1090, 0.0
  %vm1093 = vcmp.gt.f32.partialorder %v1091, 0.0
  %v1094 = vmul.f32 %v1090, 0.2
  %v1095 = vmul.f32 %v1091, 0.2
  %v1096 = vsel %vm1092, %v1090, %v1094
  %v1097 = vsel %vm1093, %v1091, %v1095
  %v1098 = vadd.f32 %v1096, %v101
  %v1099 = vadd.f32 %v1097, %v102
  %v1100 = vsel %vm281, %v1098, -inf
  %1101 = vmax.xlane.f32.xlu0 %v1100
  %v1102 = vpop.xlane.xlu0 %1101
  %v1103 = vsel %vm281, %v1099, -inf
  %1104 = vmax.xlane.f32.xlu0 %v1103
  %v1105 = vpop.xlane.xlu0 %1104
  %v1106 = vsub.f32 %v1098, %v1102
  %v1107 = vsub.f32 %v1099, %v1105
  %v1108 = vmul.f32 %v1106, 1.442695
  %v1109 = vpow.pop %v1108
  %v1110 = vmul.f32 %v1107, 1.442695
  %v1111 = vpow.pop %v1110
  %v1112 = vsel %vm281, %v1109, 0.0
  %1113 = vadd.xlane.f32.xlu0 %v1112
  %v1114 = vpop.xlane.xlu0 %1113
  %v1115 = vsel %vm281, %v1111, 0.0
  %1116 = vadd.xlane.f32.xlu0 %v1115
  %v1117 = vpop.xlane.xlu0 %1116
  %v1118 = vrcp.pop %v1114
  %v1119 = vrcp.pop %v1117
  %v1120 = vmul.f32 %v1109, %v1118
  %v1121 = vmul.f32 %v1111, %v1119
  %v1122 = vpack.c.bf16 %v1121, %v1120
  %v1123 = vpack.c.bf16 %v1023, %v1020
  %v1125 = vlaneseq
  %v1126 = vshrl.u32 %v1125, 7
  %v1127 = vsub.s32 0, %v1126
  %v1128 = vrot.slane %v978, %v1127
  %v1131 = vsel %vm281, %v1122, 0
  %1133 = vmatprep.subr.bf16.mxu0 0
  %1134 = vmatpush1.bf16.msra.mxu0 %v1123
  %1135 = vmatprep.subr.bf16.mxu0 0
  %1136 = vmatpush1.bf16.msra.mxu0 0
  %1137 = vmatprep.subr.bf16.mxu0 0
  %1138 = vmatpush1.bf16.msra.mxu0 0
  %1139 = vmatprep.subr.bf16.mxu0 0
  %1140 = vmatpush1.bf16.msra.mxu0 0
  %1141 = vmatprep.subr.bf16.mxu0 0
  %1142 = vmatpush1.bf16.msra.mxu0 0
  %1143 = vmatprep.subr.bf16.mxu0 0
  %1144 = vmatpush1.bf16.msra.mxu0 0
  %1145 = vmatprep.subr.bf16.mxu0 0
  %1146 = vmatpush1.bf16.msra.mxu0 0
  %1147 = vmatprep.subr.bf16.mxu0 0
  %1148 = vmatpush1.bf16.msra.mxu0 0
  %1149 = vmatprep.subr.bf16.mxu0 0
  %1150 = vmatpush1.bf16.msra.mxu0 0
  %1151 = vmatprep.subr.bf16.mxu0 0
  %1152 = vmatpush1.bf16.msra.mxu0 0
  %1153 = vmatprep.subr.bf16.mxu0 0
  %1154 = vmatpush1.bf16.msra.mxu0 0
  %1155 = vmatprep.subr.bf16.mxu0 0
  %1156 = vmatpush1.bf16.msra.mxu0 0
  %1157 = vmatprep.subr.bf16.mxu0 0
  %1158 = vmatpush1.bf16.msra.mxu0 0
  %1159 = vmatprep.subr.bf16.mxu0 0
  %1160 = vmatpush1.bf16.msra.mxu0 0
  %1161 = vmatprep.subr.bf16.mxu0 0
  %1162 = vmatpush1.bf16.msra.mxu0 0
  %1163 = vmatprep.subr.bf16.mxu0 0
  %1164 = vmatpush1.bf16.msra.mxu0 0
  %1165 = vmatprep.mubr.bf16.mxu0 0
  %1166 = vmatmul.mubr.bf16.gmra.mrb[0].mxu0 %v1131
  %v1167 = vpop.f32.mrb[0].mxu0
  %v1168 = vadd.f32 %v1128, %v1167
  %v1169 = vpop.f32.mrb[0].mxu0
  %v1170 = vpop.f32.mrb[0].mxu0
  %v1171 = vadd.f32 %v1128, %v1170
  %v1172 = vpop.f32.mrb[0].mxu0
  %1173 = vdwg.mxu0
  %v1174 = vld [vmem:[%s15] sm:$0x1]
  %v1175 = vld [vmem:[%s16] sm:$0x1]
  %v1176 = vld [vmem:[%s17] sm:$0x1]
  %v1177 = vmul.f32 %v1168, %v894
  %v1178 = vmul.f32 %v1171, %v899
  %v1179 = vsel %vm113, %v1177, 0.0
  %v1180 = vsel %vm113, %v1178, 0.0
  %v1181 = vadd.f32 %v1179, %v1180
  %v1182 = vrot.slane %v1181, 4
  %v1183 = vadd.f32 %v1181, %v1182
  %v1184 = vrot.slane %v1183, 2
  %v1185 = vadd.f32 %v1183, %v1184
  %v1186 = vrot.slane %v1185, 1
  %v1187 = vadd.f32 %v1185, %v1186
  %v1188 = vmul.f32 %v1187, %v916
  %v1189 = vmul.f32 %v1188, %v1176
  %v1190 = vlaneseq
  %v1191 = vshrl.u32 %v1190, 7
  %v1192 = vsub.s32 0, %v1191
  %v1193 = vrot.slane %v1189, %v1192
  %v1194 = vsub.f32 %v1168, %v1193
  %v1195 = vsub.f32 %v1171, %v1193
  %v1196 = vmul.f32 %v1194, %v894
  %v1197 = vmul.f32 %v1195, %v899
  %v1198 = vmul.f32 %v1196, %v1196
  %v1199 = vmul.f32 %v1197, %v1197
  %v1200 = vsel %vm113, %v1198, 0.0
  %v1201 = vsel %vm113, %v1199, 0.0
  %v1202 = vadd.f32 %v1200, %v1201
  %v1203 = vrot.slane %v1202, 4
  %v1204 = vadd.f32 %v1202, %v1203
  %v1205 = vrot.slane %v1204, 2
  %v1206 = vadd.f32 %v1204, %v1205
  %v1207 = vrot.slane %v1206, 1
  %v1208 = vadd.f32 %v1206, %v1207
  %v1209 = vmul.f32 %v1208, %v916
  %v1210 = vadd.f32 %v1209, 1e-05
  %v1211 = vrsqrt.pop %v1210
  %v1212 = vmul.f32 %v1194, %v1211
  %v1213 = vmul.f32 %v1195, %v1211
  %v1215 = vlaneseq
  %v1216 = vshrl.u32 %v1215, 7
  %v1217 = vsub.s32 0, %v1216
  %v1218 = vrot.slane %v1174, %v1217
  %v1220 = vmul.f32 %v1212, %v1218
  %v1221 = vmul.f32 %v1213, %v1218
  %v1223 = vlaneseq
  %v1224 = vshrl.u32 %v1223, 7
  %v1225 = vsub.s32 0, %v1224
  %v1226 = vrot.slane %v1175, %v1225
  %v1228 = vadd.f32 %v1220, %v1226
  %v1229 = vadd.f32 %v1221, %v1226
  %vm1230 = vcmp.gt.f32.partialorder %v1228, 0.0
  %vm1231 = vcmp.gt.f32.partialorder %v1229, 0.0
  %v1232 = vmin.f32 %v1228, 0.0
  %v1233 = vmin.f32 %v1229, 0.0
  %v1234 = vmul.f32 %v1232, 1.442695
  %v1235 = vpow.pop %v1234
  %v1236 = vmul.f32 %v1233, 1.442695
  %v1237 = vpow.pop %v1236
  %v1238 = vsub.f32 %v1235, 1.0
  %v1239 = vsub.f32 %v1237, 1.0
  %v1240 = vsel %vm1230, %v1228, %v1238
  %v1241 = vsel %vm1231, %v1229, %v1239
  %v1242 = vld [vmem:[%s18] sm:$0xff]
  %v1243 = vld [vmem:[%s19] sm:$0x1]
  %v1244 = vld [vmem:[%s20] sm:$0x1]
  %v1245 = vld [vmem:[%s21] sm:$0x1]
  %v1246 = vpack.c.bf16 %v1241, %v1240
  %v1247 = vpack.c.bf16 %v1242, %v1242
  %v1249 = vsel %vm113, %v1246, 0
  %v1252 = vsel %vm117, %v1247, 0
  %1254 = vmatprep.subr.bf16.mxu0 0
  %1255 = vmatpush1.bf16.msra.mxu0 %v1252
  %1256 = vmatprep.subr.bf16.mxu0 0
  %1257 = vmatpush1.bf16.msra.mxu0 0
  %1258 = vmatprep.subr.bf16.mxu0 0
  %1259 = vmatpush1.bf16.msra.mxu0 0
  %1260 = vmatprep.subr.bf16.mxu0 0
  %1261 = vmatpush1.bf16.msra.mxu0 0
  %1262 = vmatprep.subr.bf16.mxu0 0
  %1263 = vmatpush1.bf16.msra.mxu0 0
  %1264 = vmatprep.subr.bf16.mxu0 0
  %1265 = vmatpush1.bf16.msra.mxu0 0
  %1266 = vmatprep.subr.bf16.mxu0 0
  %1267 = vmatpush1.bf16.msra.mxu0 0
  %1268 = vmatprep.subr.bf16.mxu0 0
  %1269 = vmatpush1.bf16.msra.mxu0 0
  %1270 = vmatprep.subr.bf16.mxu0 0
  %1271 = vmatpush1.bf16.msra.mxu0 0
  %1272 = vmatprep.subr.bf16.mxu0 0
  %1273 = vmatpush1.bf16.msra.mxu0 0
  %1274 = vmatprep.subr.bf16.mxu0 0
  %1275 = vmatpush1.bf16.msra.mxu0 0
  %1276 = vmatprep.subr.bf16.mxu0 0
  %1277 = vmatpush1.bf16.msra.mxu0 0
  %1278 = vmatprep.subr.bf16.mxu0 0
  %1279 = vmatpush1.bf16.msra.mxu0 0
  %1280 = vmatprep.subr.bf16.mxu0 0
  %1281 = vmatpush1.bf16.msra.mxu0 0
  %1282 = vmatprep.subr.bf16.mxu0 0
  %1283 = vmatpush1.bf16.msra.mxu0 0
  %1284 = vmatprep.subr.bf16.mxu0 0
  %1285 = vmatpush1.bf16.msra.mxu0 0
  %1286 = vmatprep.mubr.bf16.mxu0 0
  %1287 = vmatmul.mubr.bf16.gmra.mrb[0].mxu0 %v1249
  %v1288 = vpop.f32.mrb[0].mxu0
  %v1289 = vadd.f32 0.0, %v1288
  %v1290 = vpop.f32.mrb[0].mxu0
  %v1291 = vpop.f32.mrb[0].mxu0
  %v1292 = vadd.f32 0.0, %v1291
  %v1293 = vpop.f32.mrb[0].mxu0
  %1294 = vdwg.mxu0
  %v1296 = vlaneseq
  %v1297 = vshrl.u32 %v1296, 7
  %v1298 = vsub.s32 0, %v1297
  %v1299 = vrot.slane %v1243, %v1298
  %v1301 = vmul.f32 %v1289, %v1299
  %v1302 = vmul.f32 %v1292, %v1299
  %vm1303 = vcmask 31744
  %v1304 = vsel %vm1303, %v1301, 0.0
  %1305 = vadd.xlane.f32.xlu0 %v1304
  %v1306 = vpop.xlane.xlu0 %1305
  %v1307 = vsel %vm1303, %v1302, 0.0
  %1308 = vadd.xlane.f32.xlu0 %v1307
  %v1309 = vpop.xlane.xlu0 %1308
  %v1311 = vlaneseq
  %v1312 = vshrl.u32 %v1311, 7
  %v1313 = vsub.s32 0, %v1312
  %v1314 = vrot.slane %v1244, %v1313
  %v1316 = vmul.f32 %v1289, %v1314
  %v1317 = vmul.f32 %v1292, %v1314
  %v1318 = vsel %vm1303, %v1316, 0.0
  %1319 = vadd.xlane.f32.xlu0 %v1318
  %v1320 = vpop.xlane.xlu0 %1319
  %v1321 = vsel %vm1303, %v1317, 0.0
  %1322 = vadd.xlane.f32.xlu0 %v1321
  %v1323 = vpop.xlane.xlu0 %1322
  %1324 = vxpose.xlu0.b32.start [1/16] %v1306, 128
  %1325 = vxpose.xlu0.b32.cont [2/16] %v1309, 128
  %1326 = vxpose.xlu0.b32.cont [3/16] 0.0, 128
  %1327 = vxpose.xlu0.b32.cont [4/16] 0.0, 128
  %1328 = vxpose.xlu0.b32.cont [5/16] 0.0, 128
  %1329 = vxpose.xlu0.b32.cont [6/16] 0.0, 128
  %1330 = vxpose.xlu0.b32.cont [7/16] 0.0, 128
  %1331 = vxpose.xlu0.b32.cont [8/16] 0.0, 128
  %1332 = vxpose.xlu0.b32.cont [9/16] 0.0, 128
  %1333 = vxpose.xlu0.b32.cont [10/16] 0.0, 128
  %1334 = vxpose.xlu0.b32.cont [11/16] 0.0, 128
  %1335 = vxpose.xlu0.b32.cont [12/16] 0.0, 128
  %1336 = vxpose.xlu0.b32.cont [13/16] 0.0, 128
  %1337 = vxpose.xlu0.b32.cont [14/16] 0.0, 128
  %1338 = vxpose.xlu0.b32.cont [15/16] 0.0, 128
  %1339 = vxpose.xlu0.b32.end [16/16] 0.0, 128
  %v1340 = vpop.trf.xlu0
  %v1341 = vpop.trf.xlu0
  %v1342 = vpop.trf.xlu0
  %v1343 = vpop.trf.xlu0
  %v1344 = vpop.trf.xlu0
  %v1345 = vpop.trf.xlu0
  %v1346 = vpop.trf.xlu0
  %v1347 = vpop.trf.xlu0
  %v1348 = vpop.trf.xlu0
  %v1349 = vpop.trf.xlu0
  %v1350 = vpop.trf.xlu0
  %v1351 = vpop.trf.xlu0
  %v1352 = vpop.trf.xlu0
  %v1353 = vpop.trf.xlu0
  %v1354 = vpop.trf.xlu0
  %v1355 = vpop.trf.xlu0
  %v1356 = vlaneseq
  %v1357 = vshrl.u32 %v1356, 7
  %v1358 = vsub.s32 0, %v1357
  %v1359 = vrot.slane %v1340, %v1358
  %v1360 = vadd.f32 %v1320, %v1359
  %v1361 = vadd.f32 %v1323, %v1359
  %vm1362 = vcmp.gt.f32.partialorder %v1360, 0.0
  %vm1363 = vcmp.gt.f32.partialorder %v1361, 0.0
  %v1364 = vmul.f32 %v1360, 0.2
  %v1365 = vmul.f32 %v1361, 0.2
  %v1366 = vsel %vm1362, %v1360, %v1364
  %v1367 = vsel %vm1363, %v1361, %v1365
  %v1368 = vadd.f32 %v1366, %v101
  %v1369 = vadd.f32 %v1367, %v102
  %v1370 = vsel %vm281, %v1368, -inf
  %1371 = vmax.xlane.f32.xlu0 %v1370
  %v1372 = vpop.xlane.xlu0 %1371
  %v1373 = vsel %vm281, %v1369, -inf
  %1374 = vmax.xlane.f32.xlu0 %v1373
  %v1375 = vpop.xlane.xlu0 %1374
  %v1376 = vsub.f32 %v1368, %v1372
  %v1377 = vsub.f32 %v1369, %v1375
  %v1378 = vmul.f32 %v1376, 1.442695
  %v1379 = vpow.pop %v1378
  %v1380 = vmul.f32 %v1377, 1.442695
  %v1381 = vpow.pop %v1380
  %v1382 = vsel %vm281, %v1379, 0.0
  %1383 = vadd.xlane.f32.xlu0 %v1382
  %v1384 = vpop.xlane.xlu0 %1383
  %v1385 = vsel %vm281, %v1381, 0.0
  %1386 = vadd.xlane.f32.xlu0 %v1385
  %v1387 = vpop.xlane.xlu0 %1386
  %v1388 = vrcp.pop %v1384
  %v1389 = vrcp.pop %v1387
  %v1390 = vmul.f32 %v1379, %v1388
  %v1391 = vmul.f32 %v1381, %v1389
  %v1392 = vpack.c.bf16 %v1391, %v1390
  %v1393 = vpack.c.bf16 %v1292, %v1289
  %v1395 = vlaneseq
  %v1396 = vshrl.u32 %v1395, 7
  %v1397 = vsub.s32 0, %v1396
  %v1398 = vrot.slane %v1245, %v1397
  %v1401 = vsel %vm281, %v1392, 0
  %1403 = vmatprep.subr.bf16.mxu0 0
  %1404 = vmatpush1.bf16.msra.mxu0 %v1393
  %1405 = vmatprep.subr.bf16.mxu0 0
  %1406 = vmatpush1.bf16.msra.mxu0 0
  %1407 = vmatprep.subr.bf16.mxu0 0
  %1408 = vmatpush1.bf16.msra.mxu0 0
  %1409 = vmatprep.subr.bf16.mxu0 0
  %1410 = vmatpush1.bf16.msra.mxu0 0
  %1411 = vmatprep.subr.bf16.mxu0 0
  %1412 = vmatpush1.bf16.msra.mxu0 0
  %1413 = vmatprep.subr.bf16.mxu0 0
  %1414 = vmatpush1.bf16.msra.mxu0 0
  %1415 = vmatprep.subr.bf16.mxu0 0
  %1416 = vmatpush1.bf16.msra.mxu0 0
  %1417 = vmatprep.subr.bf16.mxu0 0
  %1418 = vmatpush1.bf16.msra.mxu0 0
  %1419 = vmatprep.subr.bf16.mxu0 0
  %1420 = vmatpush1.bf16.msra.mxu0 0
  %1421 = vmatprep.subr.bf16.mxu0 0
  %1422 = vmatpush1.bf16.msra.mxu0 0
  %1423 = vmatprep.subr.bf16.mxu0 0
  %1424 = vmatpush1.bf16.msra.mxu0 0
  %1425 = vmatprep.subr.bf16.mxu0 0
  %1426 = vmatpush1.bf16.msra.mxu0 0
  %1427 = vmatprep.subr.bf16.mxu0 0
  %1428 = vmatpush1.bf16.msra.mxu0 0
  %1429 = vmatprep.subr.bf16.mxu0 0
  %1430 = vmatpush1.bf16.msra.mxu0 0
  %1431 = vmatprep.subr.bf16.mxu0 0
  %1432 = vmatpush1.bf16.msra.mxu0 0
  %1433 = vmatprep.subr.bf16.mxu0 0
  %1434 = vmatpush1.bf16.msra.mxu0 0
  %1435 = vmatprep.mubr.bf16.mxu0 0
  %1436 = vmatmul.mubr.bf16.gmra.mrb[0].mxu0 %v1401
  %v1437 = vpop.f32.mrb[0].mxu0
  %v1438 = vadd.f32 %v1398, %v1437
  %v1439 = vpop.f32.mrb[0].mxu0
  %v1440 = vpop.f32.mrb[0].mxu0
  %v1441 = vadd.f32 %v1398, %v1440
  %v1442 = vpop.f32.mrb[0].mxu0
  %1443 = vdwg.mxu0
  %s1444 = sld [smem:[#allocation4]]
  %p1445 = scmp.gt.s32.totalorder %s1444, 0
  %s1446 = scalar_select %p1445, 1, 0
  %s1447 = scvt.s32.f32 %s1446
  %v1448 = vstv %s1447
  %v1449 = vmul.f32 %v1448, %v1438
  %v1450 = vmul.f32 %v1448, %v1441
  %v1451 = vadd.f32 %v156, %v1449
  %v1452 = vadd.f32 %v159, %v1450
  %1453 = vst.msk [vmem:[%s24] sm:$0xff] %vm1303, %v1451
  %1454 = vst.msk [vmem:[%s24 + $0x8] sm:$0xff] %vm1303, %v1452
  // Predicated region
  $region94: #{tpu_custom_call.1} parent=0 // pred_check
    _
  $region95: #{tpu_custom_call.1} parent=0 // pred_check_branch
    %1456 = sbr.rel (0) target = $region97
  $region96: #{tpu_custom_call.1} parent=0 // pred_region
    _
  $region97: #{tpu_custom_call.1} parent=0 // pred_fallthru
    _
  // Predicated region
  $region98: #{tpu_custom_call.1} parent=0 // pred_check
    _
  $region99: #{tpu_custom_call.1} parent=0 // pred_check_branch
    %1458 = sbr.rel (0) target = $region101
  $region100: #{tpu_custom_call.1} parent=0 // pred_region
    _
  $region101: #{tpu_custom_call.1} parent=0 // pred_fallthru
    _

</llo_original>
